<compile_context>
chip_gen: v7x
topology: tpu7x:2x2x1
jax: 0.10.0
libtpu: 0.0.40
codegen_flags: <defaults>
</compile_context>

<pallas_src>
import math

import jax
import jax.numpy as jnp
from jax.experimental import pallas as pl
from jax.experimental.pallas import tpu as pltpu

# ----------------------------- config ---------------------------------------
B = 2           # batch
S = 8           # sequence length
D_MODEL = 32    # d_model
NUM_HEADS = 4   # num_heads
D_KV = 8        # d_kv  -> d_attn_out = 32
HDK = NUM_HEADS * D_KV
NUM_BUCKETS = 32
MAX_DISTANCE = 128
ATTN_SCALE = True       # config.attn_scale
LN_EPS = 1e-6           # config.layer_norm_epsilon
NEG_INF = -1e9          # masks cross-batch pairs; exp() underflows to 0.0


# ----------------------------- kernel ----------------------------------------
def self_attention_kernel(x_ref, bias_ref, w_ref, o_ref):
    """Both batch elements in one block:
       T5-LN -> one fused QKV matmul -> per-head attention over the folded
       (batch*seq) token axis -> single fused O-proj matmul -> residual add.

    x_ref   : [B*S, D]               tokens (batch folded into rows)
    bias_ref: [H, B*S, B*S]          position bias + additive mask, cross-batch
                                     entries pre-set to -1e9
    w_ref   : [D, 3*H*dk + D] = [32,128]  lane-dense slab  [Wq|Wk|Wv|Wo]
                                     (LN weight and 1/sqrt(dk) pre-folded)
    o_ref   : [B*S, D]
    """
    x = x_ref[...]                                        # [16, 32]
    w = w_ref[...]                                        # [32, 128]

    # T5-style LayerNorm: no mean subtraction, no bias.  The LN weight is
    # folded into the QKV columns of the slab, so only the rsqrt scaling
    # happens here.
    var = jnp.mean(x * x, axis=-1, keepdims=True)
    xn = x * jax.lax.rsqrt(var + LN_EPS)                  # [16, 32]

    # Single fused QKV projection: [16,32] @ [32,96] (one MXU push).
    qkv = jnp.dot(xn, w[:, :3 * HDK],
                  preferred_element_type=jnp.float32)     # [16, 96]

    # Head-major views via static lane slices (columns are head-major inside
    # each of the q|k|v regions).
    def split_heads(off):
        return jnp.stack(
            [qkv[:, off + h * D_KV: off + (h + 1) * D_KV]
             for h in range(NUM_HEADS)])                  # [H, B*S, dk]

    q = split_heads(0)
    k = split_heads(HDK)
    v = split_heads(2 * HDK)

    # Scores over the folded token axis.  1/sqrt(dk) is folded into Wq.
    # Cross-batch (and user-masked) pairs are already -1e9 in bias_ref.
    scores = jnp.einsum("hie,hje->hij", q, k,
                        preferred_element_type=jnp.float32)   # [H, 16, 16]
    scores = scores + bias_ref[...]

    # Numerically stable softmax; normalizer via the EUP approx reciprocal.
    m = jnp.max(scores, axis=-1, keepdims=True)
    p = jnp.exp(scores - m)
    denom = jnp.sum(p, axis=-1, keepdims=True)
    p = p * pl.reciprocal(denom, approx=True)

    ctx = jnp.einsum("hij,hje->hie", p, v,
                     preferred_element_type=jnp.float32)      # [H, 16, dk]

    # Relayout to [B*S, H*dk] and do O-projection + head reduction as ONE
    # matmul (head sum accumulates inside the MXU).
    ctx_flat = jnp.concatenate([ctx[h] for h in range(NUM_HEADS)],
                               axis=1)                        # [16, 32]
    attn_out = jnp.dot(ctx_flat, w[:, 3 * HDK:],
                       preferred_element_type=jnp.float32)    # [16, 32]

    o_ref[...] = x + attn_out                                 # residual add


# ----------------------------- wrappers ---------------------------------------
def prepare_params(params):
    """One-time weight re-layout (run once, OUTSIDE the jitted hot path).

    Builds the lane-dense [D, 3*H*dk + D] = [32, 128] slab:
      columns [0:96)   = LN-weight-scaled [Wq * 1/sqrt(dk) | Wk | Wv]
      columns [96:128) = Wo  ([H*dk, D])
    """
    scale = (1.0 / math.sqrt(D_KV)) if ATTN_SCALE else 1.0
    ln = params["ln_w"].reshape(D_MODEL, 1)
    wqkv = jnp.concatenate(
        [params["wq"] * scale, params["wk"], params["wv"]], axis=1)   # [32, 96]
    slab = jnp.concatenate([ln * wqkv, params["wo"]], axis=1)         # [32, 128]
    return slab.astype(jnp.float32)


def self_attention_forward(x, attention_mask, position_bias, slab):
    """x: [B,S,D]; attention_mask: additive [B,1,S]; position_bias: [1,H,S,S];
    slab: [D, 3*H*dk + D] from prepare_params.
    Returns (hidden_states, present_key_value=None, position_bias)."""
    b, s, d = x.shape

    # Fold the additive mask (and the batch-block structure of the folded
    # token axis) into the bias, outside the kernel.
    pb_big = jnp.tile(position_bias[0], (1, b, b))         # [H, B*S, B*S]
    mask_flat = attention_mask.reshape(b * s)              # key-indexed additive
    tok_batch = jnp.arange(b * s) // s
    same_batch = tok_batch[:, None] == tok_batch[None, :]  # [B*S, B*S]
    bias_full = jnp.where(same_batch[None],
                          pb_big + mask_flat[None, None, :],
                          NEG_INF).astype(jnp.float32)     # [H, B*S, B*S]

    hidden = pl.pallas_call(
        self_attention_kernel,
        out_shape=jax.ShapeDtypeStruct((b * s, d), x.dtype),
        in_specs=[
            pl.BlockSpec(memory_space=pltpu.MemorySpace.VMEM),  # tokens
            pl.BlockSpec(memory_space=pltpu.MemorySpace.VMEM),  # bias+mask
            pl.BlockSpec(memory_space=pltpu.MemorySpace.VMEM),  # weight slab
        ],
        out_specs=pl.BlockSpec(memory_space=pltpu.MemorySpace.VMEM),
    )(x.reshape(b * s, d), bias_full, slab)

    return hidden.reshape(b, s, d), None, position_bias


# --------------------- relative position bias (precomputed) -------------------
def _relative_position_bucket(relative_position, bidirectional=True,
                              num_buckets=32, max_distance=128):
    relative_buckets = jnp.zeros_like(relative_position)
    if bidirectional:
        num_buckets //= 2
        relative_buckets = relative_buckets + (
            relative_position > 0).astype(jnp.int32) * num_buckets
        relative_position = jnp.abs(relative_position)
    else:
        relative_position = -jnp.minimum(relative_position, 0)
    max_exact = num_buckets // 2
    is_small = relative_position < max_exact
    rel_if_large = max_exact + (
        jnp.log(relative_position.astype(jnp.float32) / max_exact)
        / math.log(max_distance / max_exact) * (num_buckets - max_exact)
    ).astype(jnp.int32)
    rel_if_large = jnp.minimum(rel_if_large, num_buckets - 1)
    relative_buckets = relative_buckets + jnp.where(
        is_small, relative_position, rel_if_large)
    return relative_buckets


def compute_position_bias(rel_emb, q_len, k_len, is_decoder=False):
    """Returns [1, H, q_len, k_len] like Attention.compute_bias."""
    ctx = jnp.arange(q_len, dtype=jnp.int32)[:, None]
    mem = jnp.arange(k_len, dtype=jnp.int32)[None, :]
    rel = mem - ctx
    buckets = _relative_position_bucket(rel, bidirectional=not is_decoder,
                                        num_buckets=NUM_BUCKETS,
                                        max_distance=MAX_DISTANCE)
    values = rel_emb[buckets]                      # [q, k, H]
    return jnp.transpose(values, (2, 0, 1))[None]  # [1, H, q, k]


# ----------------------------- pure-JAX reference -----------------------------
def self_attention_reference(x, attention_mask, position_bias, params):
    var = jnp.mean(x.astype(jnp.float32) ** 2, -1, keepdims=True)
    xn = x * jax.lax.rsqrt(var + LN_EPS) * params["ln_w"]
    q = (xn @ params["wq"]).reshape(B, S, NUM_HEADS, D_KV).transpose(0, 2, 1, 3)
    k = (xn @ params["wk"]).reshape(B, S, NUM_HEADS, D_KV).transpose(0, 2, 1, 3)
    v = (xn @ params["wv"]).reshape(B, S, NUM_HEADS, D_KV).transpose(0, 2, 1, 3)
    scores = jnp.einsum("bhqd,bhkd->bhqk", q, k)
    if ATTN_SCALE:
        scores = scores / math.sqrt(D_KV)
    scores = scores + attention_mask[:, :, None, :] + position_bias
    probs = jax.nn.softmax(scores, axis=-1)
    ctx = jnp.einsum("bhqk,bhkd->bhqd", probs, v)
    ctx = ctx.transpose(0, 2, 1, 3).reshape(B, S, -1)
    return x + ctx @ params["wo"]


# ----------------------------- main --------------------------------------------
if __name__ == "__main__":
    key = jax.random.PRNGKey(0)
    keys = jax.random.split(key, 8)
    hdk = NUM_HEADS * D_KV

    def init(k, shape, scale=0.05):
        return scale * jax.random.normal(k, shape, dtype=jnp.float32)

    # Weights stored as [in, out] (transposed relative to torch nn.Linear).
    params = {
        "wq": init(keys[0], (D_MODEL, hdk)),
        "wk": init(keys[1], (D_MODEL, hdk)),
        "wv": init(keys[2], (D_MODEL, hdk)),
        "wo": init(keys[3], (hdk, D_MODEL)),
        "ln_w": jnp.ones((1, D_MODEL), jnp.float32),
        "rel_emb": init(keys[4], (NUM_BUCKETS, NUM_HEADS), scale=0.1),
    }

    x = jax.random.normal(keys[5], (B, S, D_MODEL), dtype=jnp.float32)
    # Additive attention mask [B, 1, S]: mask out last 2 keys of batch 1.
    mask = jnp.zeros((B, 1, S), jnp.float32)
    mask = mask.at[1, 0, S - 2:].set(-10000.0)

    # Input-independent precomputation, off the hot path:
    position_bias = compute_position_bias(params["rel_emb"], S, S,
                                          is_decoder=False)
    slab = prepare_params(params)          # one-time weight re-layout

    fwd = jax.jit(self_attention_forward)
    hidden, present, bias_out = fwd(x, mask, position_bias, slab)
    hidden = jax.block_until_ready(hidden)

    ref = self_attention_reference(x, mask, position_bias, params)
    assert hidden.shape == (B, S, D_MODEL)
    assert present is None
    assert bias_out.shape == (1, NUM_HEADS, S, S)
    max_err = float(jnp.max(jnp.abs(hidden - ref)))
    # Tolerance slightly looser than 2e-4: approx=True reciprocal (EUP) and the
    # folded LN-weight / 1/sqrt(dk) scaling change rounding slightly.
    assert jnp.allclose(hidden, ref, atol=1e-3, rtol=1e-3), max_err
    print("KERNEL_OK")
</pallas_src>

<mosaic_0001>
module attributes {stable_mosaic.version = 11 : i64} {
  func.func @self_attention_kernel(%arg0: memref<16x32xf32, #tpu.memory_space<vmem>>, %arg1: memref<4x16x16xf32, #tpu.memory_space<vmem>>, %arg2: memref<32x128xf32, #tpu.memory_space<vmem>>, %arg3: memref<16x32xf32, #tpu.memory_space<vmem>>) attributes {dimension_semantics = [], scalar_prefetch = 0 : i64, scratch_operands = 0 : i64, tpu.core_type = #tpu.core_type<tc>} {
    %c0 = arith.constant 0 : index
    %c0_0 = arith.constant 0 : index
    %0 = vector.load %arg0[%c0, %c0_0] : memref<16x32xf32, #tpu.memory_space<vmem>>, vector<16x32xf32>
    %c0_1 = arith.constant 0 : index
    %c0_2 = arith.constant 0 : index
    %1 = vector.load %arg2[%c0_1, %c0_2] : memref<32x128xf32, #tpu.memory_space<vmem>>, vector<32x128xf32>
    %2 = arith.mulf %0, %0 : vector<16x32xf32>
    %cst = arith.constant dense<0.000000e+00> : vector<16xf32>
    %3 = vector.multi_reduction <add>, %2, %cst [1] : vector<16x32xf32> to vector<16xf32>
    %4 = vector.shape_cast %3 : vector<16xf32> to vector<16x1xf32>
    %cst_3 = arith.constant 3.200000e+01 : f32
    %5 = vector.broadcast %cst_3 : f32 to vector<16x1xf32>
    %6 = arith.divf %4, %5 : vector<16x1xf32>
    %cst_4 = arith.constant 9.99999997E-7 : f32
    %7 = vector.broadcast %cst_4 : f32 to vector<16x1xf32>
    %8 = arith.addf %6, %7 : vector<16x1xf32>
    %9 = math.rsqrt %8 : vector<16x1xf32>
    %10 = vector.broadcast %9 : vector<16x1xf32> to vector<16x32xf32>
    %11 = arith.mulf %0, %10 : vector<16x32xf32>
    %12 = vector.extract_strided_slice %1 {offsets = [0, 0], sizes = [32, 96], strides = [1, 1]} : vector<32x128xf32> to vector<32x96xf32>
    %cst_5 = arith.constant dense<0.000000e+00> : vector<16x96xf32>
    %13 = tpu.matmul %11, %12, %cst_5 {dimension_numbers = #tpu.dot_dimension_numbers<[1], [0], [0], [1], [0, 0, 1, 1], [], []>} : vector<16x32xf32>, vector<32x96xf32>, vector<16x96xf32> -> vector<16x96xf32>
    %14 = vector.extract_strided_slice %13 {offsets = [0, 0], sizes = [16, 8], strides = [1, 1]} : vector<16x96xf32> to vector<16x8xf32>
    %15 = vector.extract_strided_slice %13 {offsets = [0, 8], sizes = [16, 8], strides = [1, 1]} : vector<16x96xf32> to vector<16x8xf32>
    %16 = vector.extract_strided_slice %13 {offsets = [0, 16], sizes = [16, 8], strides = [1, 1]} : vector<16x96xf32> to vector<16x8xf32>
    %17 = vector.extract_strided_slice %13 {offsets = [0, 24], sizes = [16, 8], strides = [1, 1]} : vector<16x96xf32> to vector<16x8xf32>
    %18 = vector.shape_cast %14 : vector<16x8xf32> to vector<1x16x8xf32>
    %19 = vector.shape_cast %15 : vector<16x8xf32> to vector<1x16x8xf32>
    %20 = vector.shape_cast %16 : vector<16x8xf32> to vector<1x16x8xf32>
    %21 = vector.shape_cast %17 : vector<16x8xf32> to vector<1x16x8xf32>
    %22 = tpu.concatenate %18, %19, %20, %21 in 0 : vector<1x16x8xf32>, vector<1x16x8xf32>, vector<1x16x8xf32>, vector<1x16x8xf32> -> vector<4x16x8xf32>
    %23 = vector.extract_strided_slice %13 {offsets = [0, 32], sizes = [16, 8], strides = [1, 1]} : vector<16x96xf32> to vector<16x8xf32>
    %24 = vector.extract_strided_slice %13 {offsets = [0, 40], sizes = [16, 8], strides = [1, 1]} : vector<16x96xf32> to vector<16x8xf32>
    %25 = vector.extract_strided_slice %13 {offsets = [0, 48], sizes = [16, 8], strides = [1, 1]} : vector<16x96xf32> to vector<16x8xf32>
    %26 = vector.extract_strided_slice %13 {offsets = [0, 56], sizes = [16, 8], strides = [1, 1]} : vector<16x96xf32> to vector<16x8xf32>
    %27 = vector.shape_cast %23 : vector<16x8xf32> to vector<1x16x8xf32>
    %28 = vector.shape_cast %24 : vector<16x8xf32> to vector<1x16x8xf32>
    %29 = vector.shape_cast %25 : vector<16x8xf32> to vector<1x16x8xf32>
    %30 = vector.shape_cast %26 : vector<16x8xf32> to vector<1x16x8xf32>
    %31 = tpu.concatenate %27, %28, %29, %30 in 0 : vector<1x16x8xf32>, vector<1x16x8xf32>, vector<1x16x8xf32>, vector<1x16x8xf32> -> vector<4x16x8xf32>
    %32 = vector.extract_strided_slice %13 {offsets = [0, 64], sizes = [16, 8], strides = [1, 1]} : vector<16x96xf32> to vector<16x8xf32>
    %33 = vector.extract_strided_slice %13 {offsets = [0, 72], sizes = [16, 8], strides = [1, 1]} : vector<16x96xf32> to vector<16x8xf32>
    %34 = vector.extract_strided_slice %13 {offsets = [0, 80], sizes = [16, 8], strides = [1, 1]} : vector<16x96xf32> to vector<16x8xf32>
    %35 = vector.extract_strided_slice %13 {offsets = [0, 88], sizes = [16, 8], strides = [1, 1]} : vector<16x96xf32> to vector<16x8xf32>
    %36 = vector.shape_cast %32 : vector<16x8xf32> to vector<1x16x8xf32>
    %37 = vector.shape_cast %33 : vector<16x8xf32> to vector<1x16x8xf32>
    %38 = vector.shape_cast %34 : vector<16x8xf32> to vector<1x16x8xf32>
    %39 = vector.shape_cast %35 : vector<16x8xf32> to vector<1x16x8xf32>
    %40 = tpu.concatenate %36, %37, %38, %39 in 0 : vector<1x16x8xf32>, vector<1x16x8xf32>, vector<1x16x8xf32>, vector<1x16x8xf32> -> vector<4x16x8xf32>
    "tpu.trace_start"() <{level = 10 : i32, message = "hie,hje->hij"}> : () -> ()
    %cst_6 = arith.constant dense<0.000000e+00> : vector<4x16x16xf32>
    %41 = tpu.matmul %22, %31, %cst_6 {dimension_numbers = #tpu.dot_dimension_numbers<[2], [2], [1], [1], [0, 0, 0, 1, 1, 1], [0], [0]>} : vector<4x16x8xf32>, vector<4x16x8xf32>, vector<4x16x16xf32> -> vector<4x16x16xf32>
    "tpu.trace_stop"() : () -> ()
    %c0_7 = arith.constant 0 : index
    %c0_8 = arith.constant 0 : index
    %c0_9 = arith.constant 0 : index
    %42 = vector.load %arg1[%c0_7, %c0_8, %c0_9] : memref<4x16x16xf32, #tpu.memory_space<vmem>>, vector<4x16x16xf32>
    %43 = arith.addf %41, %42 : vector<4x16x16xf32>
    %cst_10 = arith.constant dense<0xFF800000> : vector<4x16xf32>
    %44 = vector.multi_reduction <maximumf>, %43, %cst_10 [2] : vector<4x16x16xf32> to vector<4x16xf32>
    %45 = vector.shape_cast %44 : vector<4x16xf32> to vector<4x16x1xf32>
    %46 = vector.broadcast %45 : vector<4x16x1xf32> to vector<4x16x16xf32>
    %47 = arith.subf %43, %46 : vector<4x16x16xf32>
    %48 = math.exp %47 : vector<4x16x16xf32>
    %cst_11 = arith.constant dense<0.000000e+00> : vector<4x16xf32>
    %49 = vector.multi_reduction <add>, %48, %cst_11 [2] : vector<4x16x16xf32> to vector<4x16xf32>
    %50 = vector.shape_cast %49 : vector<4x16xf32> to vector<4x16x1xf32>
    %51 = tpu.reciprocal %50 {approx = true} : vector<4x16x1xf32> -> vector<4x16x1xf32>
    %52 = vector.broadcast %51 : vector<4x16x1xf32> to vector<4x16x16xf32>
    %53 = arith.mulf %48, %52 : vector<4x16x16xf32>
    "tpu.trace_start"() <{level = 10 : i32, message = "hij,hje->hie"}> : () -> ()
    %cst_12 = arith.constant dense<0.000000e+00> : vector<4x16x8xf32>
    %54 = tpu.matmul %53, %40, %cst_12 {dimension_numbers = #tpu.dot_dimension_numbers<[2], [1], [1], [2], [0, 0, 0, 1, 1, 2], [0], [0]>} : vector<4x16x16xf32>, vector<4x16x8xf32>, vector<4x16x8xf32> -> vector<4x16x8xf32>
    "tpu.trace_stop"() : () -> ()
    %55 = vector.extract_strided_slice %54 {offsets = [0, 0, 0], sizes = [1, 16, 8], strides = [1, 1, 1]} : vector<4x16x8xf32> to vector<1x16x8xf32>
    %56 = vector.shape_cast %55 : vector<1x16x8xf32> to vector<16x8xf32>
    %57 = vector.extract_strided_slice %54 {offsets = [1, 0, 0], sizes = [1, 16, 8], strides = [1, 1, 1]} : vector<4x16x8xf32> to vector<1x16x8xf32>
    %58 = vector.shape_cast %57 : vector<1x16x8xf32> to vector<16x8xf32>
    %59 = vector.extract_strided_slice %54 {offsets = [2, 0, 0], sizes = [1, 16, 8], strides = [1, 1, 1]} : vector<4x16x8xf32> to vector<1x16x8xf32>
    %60 = vector.shape_cast %59 : vector<1x16x8xf32> to vector<16x8xf32>
    %61 = vector.extract_strided_slice %54 {offsets = [3, 0, 0], sizes = [1, 16, 8], strides = [1, 1, 1]} : vector<4x16x8xf32> to vector<1x16x8xf32>
    %62 = vector.shape_cast %61 : vector<1x16x8xf32> to vector<16x8xf32>
    %63 = tpu.concatenate %56, %58, %60, %62 in 1 : vector<16x8xf32>, vector<16x8xf32>, vector<16x8xf32>, vector<16x8xf32> -> vector<16x32xf32>
    %64 = vector.extract_strided_slice %1 {offsets = [0, 96], sizes = [32, 32], strides = [1, 1]} : vector<32x128xf32> to vector<32x32xf32>
    %cst_13 = arith.constant dense<0.000000e+00> : vector<16x32xf32>
    %65 = tpu.matmul %63, %64, %cst_13 {dimension_numbers = #tpu.dot_dimension_numbers<[1], [0], [0], [1], [0, 0, 1, 1], [], []>} : vector<16x32xf32>, vector<32x32xf32>, vector<16x32xf32> -> vector<16x32xf32>
    %66 = arith.addf %0, %65 : vector<16x32xf32>
    %c0_14 = arith.constant 0 : index
    %c0_15 = arith.constant 0 : index
    %67 = vector.load %arg3[%c0_14, %c0_15] : memref<16x32xf32, #tpu.memory_space<vmem>>, vector<16x32xf32>
    tpu.vector_store %arg3[%c0_14, %c0_15], %66 {strides = array<i32>} : memref<16x32xf32, #tpu.memory_space<vmem>>, vector<16x32xf32>,
    return
  }
}

</mosaic_0001>

<llo_original>
// kernel: tile.7
$region0: #{tile.7}
  %s0 = inlined_call_operand.vmem [shape: f32[4,2,8,2,8], index: 0, kind: input, shape index: {}]
  %s1 = inlined_call_operand.vmem [shape: f32[4,16,16], index: 1, kind: output, shape index: {}]
  $region1: #{tile.7} parent=0
    #allocation0 [shape = 'u8[262144]{0}', space=vmem, size = 0x40000, scoped, tag = 'scoped mem for input reshape']
    %s3 = sshllo.u32 0, 2
    %s4 = smul.addr 2, 63
    %s5 = scalar_lea.vmem %s0, %s4
    %v6 = vld [vmem:[%s5] sm:%s3]
    %s7 = scalar_lea.vmem [#allocation0], 504
    %8 = vst [vmem:[%s7] sm:%s3] %v6
    %s9 = smul.addr 2, 62
    %s10 = scalar_lea.vmem %s0, %s9
    %v11 = vld [vmem:[%s10] sm:%s3]
    %s12 = scalar_lea.vmem [#allocation0], 496
    %13 = vst [vmem:[%s12] sm:%s3] %v11
    %s14 = smul.addr 2, 61
    %s15 = scalar_lea.vmem %s0, %s14
    %v16 = vld [vmem:[%s15] sm:%s3]
    %s17 = scalar_lea.vmem [#allocation0], 488
    %18 = vst [vmem:[%s17] sm:%s3] %v16
    %s19 = smul.addr 2, 60
    %s20 = scalar_lea.vmem %s0, %s19
    %v21 = vld [vmem:[%s20] sm:%s3]
    %s22 = scalar_lea.vmem [#allocation0], 480
    %23 = vst [vmem:[%s22] sm:%s3] %v21
    %s24 = smul.addr 2, 59
    %s25 = scalar_lea.vmem %s0, %s24
    %v26 = vld [vmem:[%s25] sm:%s3]
    %s27 = scalar_lea.vmem [#allocation0], 472
    %28 = vst [vmem:[%s27] sm:%s3] %v26
    %s29 = smul.addr 2, 58
    %s30 = scalar_lea.vmem %s0, %s29
    %v31 = vld [vmem:[%s30] sm:%s3]
    %s32 = scalar_lea.vmem [#allocation0], 464
    %33 = vst [vmem:[%s32] sm:%s3] %v31
    %s34 = smul.addr 2, 57
    %s35 = scalar_lea.vmem %s0, %s34
    %v36 = vld [vmem:[%s35] sm:%s3]
    %s37 = scalar_lea.vmem [#allocation0], 456
    %38 = vst [vmem:[%s37] sm:%s3] %v36
    %s39 = smul.addr 2, 56
    %s40 = scalar_lea.vmem %s0, %s39
    %v41 = vld [vmem:[%s40] sm:%s3]
    %s42 = scalar_lea.vmem [#allocation0], 448
    %43 = vst [vmem:[%s42] sm:%s3] %v41
    %s44 = smul.addr 2, 55
    %s45 = scalar_lea.vmem %s0, %s44
    %v46 = vld [vmem:[%s45] sm:%s3]
    %s47 = scalar_lea.vmem [#allocation0], 440
    %48 = vst [vmem:[%s47] sm:%s3] %v46
    %s49 = smul.addr 2, 54
    %s50 = scalar_lea.vmem %s0, %s49
    %v51 = vld [vmem:[%s50] sm:%s3]
    %s52 = scalar_lea.vmem [#allocation0], 432
    %53 = vst [vmem:[%s52] sm:%s3] %v51
    %s54 = smul.addr 2, 53
    %s55 = scalar_lea.vmem %s0, %s54
    %v56 = vld [vmem:[%s55] sm:%s3]
    %s57 = scalar_lea.vmem [#allocation0], 424
    %58 = vst [vmem:[%s57] sm:%s3] %v56
    %s59 = smul.addr 2, 52
    %s60 = scalar_lea.vmem %s0, %s59
    %v61 = vld [vmem:[%s60] sm:%s3]
    %s62 = scalar_lea.vmem [#allocation0], 416
    %63 = vst [vmem:[%s62] sm:%s3] %v61
    %s64 = smul.addr 2, 51
    %s65 = scalar_lea.vmem %s0, %s64
    %v66 = vld [vmem:[%s65] sm:%s3]
    %s67 = scalar_lea.vmem [#allocation0], 408
    %68 = vst [vmem:[%s67] sm:%s3] %v66
    %s69 = smul.addr 2, 50
    %s70 = scalar_lea.vmem %s0, %s69
    %v71 = vld [vmem:[%s70] sm:%s3]
    %s72 = scalar_lea.vmem [#allocation0], 400
    %73 = vst [vmem:[%s72] sm:%s3] %v71
    %s74 = smul.addr 2, 49
    %s75 = scalar_lea.vmem %s0, %s74
    %v76 = vld [vmem:[%s75] sm:%s3]
    %s77 = scalar_lea.vmem [#allocation0], 392
    %78 = vst [vmem:[%s77] sm:%s3] %v76
    %s79 = smul.addr 2, 48
    %s80 = scalar_lea.vmem %s0, %s79
    %v81 = vld [vmem:[%s80] sm:%s3]
    %s82 = scalar_lea.vmem [#allocation0], 384
    %83 = vst [vmem:[%s82] sm:%s3] %v81
    %s84 = smul.addr 2, 47
    %s85 = scalar_lea.vmem %s0, %s84
    %v86 = vld [vmem:[%s85] sm:%s3]
    %s87 = scalar_lea.vmem [#allocation0], 376
    %88 = vst [vmem:[%s87] sm:%s3] %v86
    %s89 = smul.addr 2, 46
    %s90 = scalar_lea.vmem %s0, %s89
    %v91 = vld [vmem:[%s90] sm:%s3]
    %s92 = scalar_lea.vmem [#allocation0], 368
    %93 = vst [vmem:[%s92] sm:%s3] %v91
    %s94 = smul.addr 2, 45
    %s95 = scalar_lea.vmem %s0, %s94
    %v96 = vld [vmem:[%s95] sm:%s3]
    %s97 = scalar_lea.vmem [#allocation0], 360
    %98 = vst [vmem:[%s97] sm:%s3] %v96
    %s99 = smul.addr 2, 44
    %s100 = scalar_lea.vmem %s0, %s99
    %v101 = vld [vmem:[%s100] sm:%s3]
    %s102 = scalar_lea.vmem [#allocation0], 352
    %103 = vst [vmem:[%s102] sm:%s3] %v101
    %s104 = smul.addr 2, 43
    %s105 = scalar_lea.vmem %s0, %s104
    %v106 = vld [vmem:[%s105] sm:%s3]
    %s107 = scalar_lea.vmem [#allocation0], 344
    %108 = vst [vmem:[%s107] sm:%s3] %v106
    %s109 = smul.addr 2, 42
    %s110 = scalar_lea.vmem %s0, %s109
    %v111 = vld [vmem:[%s110] sm:%s3]
    %s112 = scalar_lea.vmem [#allocation0], 336
    %113 = vst [vmem:[%s112] sm:%s3] %v111
    %s114 = smul.addr 2, 41
    %s115 = scalar_lea.vmem %s0, %s114
    %v116 = vld [vmem:[%s115] sm:%s3]
    %s117 = scalar_lea.vmem [#allocation0], 328
    %118 = vst [vmem:[%s117] sm:%s3] %v116
    %s119 = smul.addr 2, 40
    %s120 = scalar_lea.vmem %s0, %s119
    %v121 = vld [vmem:[%s120] sm:%s3]
    %s122 = scalar_lea.vmem [#allocation0], 320
    %123 = vst [vmem:[%s122] sm:%s3] %v121
    %s124 = smul.addr 2, 39
    %s125 = scalar_lea.vmem %s0, %s124
    %v126 = vld [vmem:[%s125] sm:%s3]
    %s127 = scalar_lea.vmem [#allocation0], 312
    %128 = vst [vmem:[%s127] sm:%s3] %v126
    %s129 = smul.addr 2, 38
    %s130 = scalar_lea.vmem %s0, %s129
    %v131 = vld [vmem:[%s130] sm:%s3]
    %s132 = scalar_lea.vmem [#allocation0], 304
    %133 = vst [vmem:[%s132] sm:%s3] %v131
    %s134 = smul.addr 2, 37
    %s135 = scalar_lea.vmem %s0, %s134
    %v136 = vld [vmem:[%s135] sm:%s3]
    %s137 = scalar_lea.vmem [#allocation0], 296
    %138 = vst [vmem:[%s137] sm:%s3] %v136
    %s139 = smul.addr 2, 36
    %s140 = scalar_lea.vmem %s0, %s139
    %v141 = vld [vmem:[%s140] sm:%s3]
    %s142 = scalar_lea.vmem [#allocation0], 288
    %143 = vst [vmem:[%s142] sm:%s3] %v141
    %s144 = smul.addr 2, 35
    %s145 = scalar_lea.vmem %s0, %s144
    %v146 = vld [vmem:[%s145] sm:%s3]
    %s147 = scalar_lea.vmem [#allocation0], 280
    %148 = vst [vmem:[%s147] sm:%s3] %v146
    %s149 = smul.addr 2, 34
    %s150 = scalar_lea.vmem %s0, %s149
    %v151 = vld [vmem:[%s150] sm:%s3]
    %s152 = scalar_lea.vmem [#allocation0], 272
    %153 = vst [vmem:[%s152] sm:%s3] %v151
    %s154 = smul.addr 2, 33
    %s155 = scalar_lea.vmem %s0, %s154
    %v156 = vld [vmem:[%s155] sm:%s3]
    %s157 = scalar_lea.vmem [#allocation0], 264
    %158 = vst [vmem:[%s157] sm:%s3] %v156
    %s159 = smul.addr 2, 32
    %s160 = scalar_lea.vmem %s0, %s159
    %v161 = vld [vmem:[%s160] sm:%s3]
    %s162 = scalar_lea.vmem [#allocation0], 256
    %163 = vst [vmem:[%s162] sm:%s3] %v161
    %s164 = smul.addr 2, 31
    %s165 = scalar_lea.vmem %s0, %s164
    %v166 = vld [vmem:[%s165] sm:%s3]
    %s167 = scalar_lea.vmem [#allocation0], 248
    %168 = vst [vmem:[%s167] sm:%s3] %v166
    %s169 = smul.addr 2, 30
    %s170 = scalar_lea.vmem %s0, %s169
    %v171 = vld [vmem:[%s170] sm:%s3]
    %s172 = scalar_lea.vmem [#allocation0], 240
    %173 = vst [vmem:[%s172] sm:%s3] %v171
    %s174 = smul.addr 2, 29
    %s175 = scalar_lea.vmem %s0, %s174
    %v176 = vld [vmem:[%s175] sm:%s3]
    %s177 = scalar_lea.vmem [#allocation0], 232
    %178 = vst [vmem:[%s177] sm:%s3] %v176
    %s179 = smul.addr 2, 28
    %s180 = scalar_lea.vmem %s0, %s179
    %v181 = vld [vmem:[%s180] sm:%s3]
    %s182 = scalar_lea.vmem [#allocation0], 224
    %183 = vst [vmem:[%s182] sm:%s3] %v181
    %s184 = smul.addr 2, 27
    %s185 = scalar_lea.vmem %s0, %s184
    %v186 = vld [vmem:[%s185] sm:%s3]
    %s187 = scalar_lea.vmem [#allocation0], 216
    %188 = vst [vmem:[%s187] sm:%s3] %v186
    %s189 = smul.addr 2, 26
    %s190 = scalar_lea.vmem %s0, %s189
    %v191 = vld [vmem:[%s190] sm:%s3]
    %s192 = scalar_lea.vmem [#allocation0], 208
    %193 = vst [vmem:[%s192] sm:%s3] %v191
    %s194 = smul.addr 2, 25
    %s195 = scalar_lea.vmem %s0, %s194
    %v196 = vld [vmem:[%s195] sm:%s3]
    %s197 = scalar_lea.vmem [#allocation0], 200
    %198 = vst [vmem:[%s197] sm:%s3] %v196
    %s199 = smul.addr 2, 24
    %s200 = scalar_lea.vmem %s0, %s199
    %v201 = vld [vmem:[%s200] sm:%s3]
    %s202 = scalar_lea.vmem [#allocation0], 192
    %203 = vst [vmem:[%s202] sm:%s3] %v201
    %s204 = smul.addr 2, 23
    %s205 = scalar_lea.vmem %s0, %s204
    %v206 = vld [vmem:[%s205] sm:%s3]
    %s207 = scalar_lea.vmem [#allocation0], 184
    %208 = vst [vmem:[%s207] sm:%s3] %v206
    %s209 = smul.addr 2, 22
    %s210 = scalar_lea.vmem %s0, %s209
    %v211 = vld [vmem:[%s210] sm:%s3]
    %s212 = scalar_lea.vmem [#allocation0], 176
    %213 = vst [vmem:[%s212] sm:%s3] %v211
    %s214 = smul.addr 2, 21
    %s215 = scalar_lea.vmem %s0, %s214
    %v216 = vld [vmem:[%s215] sm:%s3]
    %s217 = scalar_lea.vmem [#allocation0], 168
    %218 = vst [vmem:[%s217] sm:%s3] %v216
    %s219 = smul.addr 2, 20
    %s220 = scalar_lea.vmem %s0, %s219
    %v221 = vld [vmem:[%s220] sm:%s3]
    %s222 = scalar_lea.vmem [#allocation0], 160
    %223 = vst [vmem:[%s222] sm:%s3] %v221
    %s224 = smul.addr 2, 19
    %s225 = scalar_lea.vmem %s0, %s224
    %v226 = vld [vmem:[%s225] sm:%s3]
    %s227 = scalar_lea.vmem [#allocation0], 152
    %228 = vst [vmem:[%s227] sm:%s3] %v226
    %s229 = smul.addr 2, 18
    %s230 = scalar_lea.vmem %s0, %s229
    %v231 = vld [vmem:[%s230] sm:%s3]
    %s232 = scalar_lea.vmem [#allocation0], 144
    %233 = vst [vmem:[%s232] sm:%s3] %v231
    %s234 = smul.addr 2, 17
    %s235 = scalar_lea.vmem %s0, %s234
    %v236 = vld [vmem:[%s235] sm:%s3]
    %s237 = scalar_lea.vmem [#allocation0], 136
    %238 = vst [vmem:[%s237] sm:%s3] %v236
    %s239 = smul.addr 2, 16
    %s240 = scalar_lea.vmem %s0, %s239
    %v241 = vld [vmem:[%s240] sm:%s3]
    %s242 = scalar_lea.vmem [#allocation0], 128
    %243 = vst [vmem:[%s242] sm:%s3] %v241
    %s244 = smul.addr 2, 15
    %s245 = scalar_lea.vmem %s0, %s244
    %v246 = vld [vmem:[%s245] sm:%s3]
    %s247 = scalar_lea.vmem [#allocation0], 120
    %248 = vst [vmem:[%s247] sm:%s3] %v246
    %s249 = smul.addr 2, 14
    %s250 = scalar_lea.vmem %s0, %s249
    %v251 = vld [vmem:[%s250] sm:%s3]
    %s252 = scalar_lea.vmem [#allocation0], 112
    %253 = vst [vmem:[%s252] sm:%s3] %v251
    %s254 = smul.addr 2, 13
    %s255 = scalar_lea.vmem %s0, %s254
    %v256 = vld [vmem:[%s255] sm:%s3]
    %s257 = scalar_lea.vmem [#allocation0], 104
    %258 = vst [vmem:[%s257] sm:%s3] %v256
    %s259 = smul.addr 2, 12
    %s260 = scalar_lea.vmem %s0, %s259
    %v261 = vld [vmem:[%s260] sm:%s3]
    %s262 = scalar_lea.vmem [#allocation0], 96
    %263 = vst [vmem:[%s262] sm:%s3] %v261
    %s264 = smul.addr 2, 11
    %s265 = scalar_lea.vmem %s0, %s264
    %v266 = vld [vmem:[%s265] sm:%s3]
    %s267 = scalar_lea.vmem [#allocation0], 88
    %268 = vst [vmem:[%s267] sm:%s3] %v266
    %s269 = smul.addr 2, 10
    %s270 = scalar_lea.vmem %s0, %s269
    %v271 = vld [vmem:[%s270] sm:%s3]
    %s272 = scalar_lea.vmem [#allocation0], 80
    %273 = vst [vmem:[%s272] sm:%s3] %v271
    %s274 = smul.addr 2, 9
    %s275 = scalar_lea.vmem %s0, %s274
    %v276 = vld [vmem:[%s275] sm:%s3]
    %s277 = scalar_lea.vmem [#allocation0], 72
    %278 = vst [vmem:[%s277] sm:%s3] %v276
    %s279 = smul.addr 2, 8
    %s280 = scalar_lea.vmem %s0, %s279
    %v281 = vld [vmem:[%s280] sm:%s3]
    %s282 = scalar_lea.vmem [#allocation0], 64
    %283 = vst [vmem:[%s282] sm:%s3] %v281
    %s284 = smul.addr 2, 7
    %s285 = scalar_lea.vmem %s0, %s284
    %v286 = vld [vmem:[%s285] sm:%s3]
    %s287 = scalar_lea.vmem [#allocation0], 56
    %288 = vst [vmem:[%s287] sm:%s3] %v286
    %s289 = smul.addr 2, 6
    %s290 = scalar_lea.vmem %s0, %s289
    %v291 = vld [vmem:[%s290] sm:%s3]
    %s292 = scalar_lea.vmem [#allocation0], 48
    %293 = vst [vmem:[%s292] sm:%s3] %v291
    %s294 = smul.addr 2, 5
    %s295 = scalar_lea.vmem %s0, %s294
    %v296 = vld [vmem:[%s295] sm:%s3]
    %s297 = scalar_lea.vmem [#allocation0], 40
    %298 = vst [vmem:[%s297] sm:%s3] %v296
    %s299 = smul.addr 2, 4
    %s300 = scalar_lea.vmem %s0, %s299
    %v301 = vld [vmem:[%s300] sm:%s3]
    %s302 = scalar_lea.vmem [#allocation0], 32
    %303 = vst [vmem:[%s302] sm:%s3] %v301
    %s304 = smul.addr 2, 3
    %s305 = scalar_lea.vmem %s0, %s304
    %v306 = vld [vmem:[%s305] sm:%s3]
    %s307 = scalar_lea.vmem [#allocation0], 24
    %308 = vst [vmem:[%s307] sm:%s3] %v306
    %s309 = smul.addr 2, 2
    %s310 = scalar_lea.vmem %s0, %s309
    %v311 = vld [vmem:[%s310] sm:%s3]
    %s312 = scalar_lea.vmem [#allocation0], 16
    %313 = vst [vmem:[%s312] sm:%s3] %v311
    %s314 = scalar_lea.vmem %s0, 2
    %v315 = vld [vmem:[%s314] sm:%s3]
    %s316 = scalar_lea.vmem [#allocation0], 8
    %317 = vst [vmem:[%s316] sm:%s3] %v315
    %v318 = vld [vmem:[%s0] sm:%s3]
    %319 = vst [vmem:[#allocation0] sm:%s3] %v318
    %v320 = vld [vmem:[#allocation0] ss:$8 sm:$0xf]
    %v321 = vld [vmem:[#allocation0] ss:$8 sm:$0xf0]
    %vm322 = vcmask 1047556
    %v323 = vsel %vm322, %v321, %v320
    %vm324 = vcmask 64512
    %325 = vst.msk [vmem:[%s1] sm:$0xff] %vm324, %v323
    %s326 = scalar_lea.vmem [#allocation0], 64
    %v327 = vld [vmem:[%s326] ss:$8 sm:$0xf]
    %s328 = scalar_lea.vmem [#allocation0], 64
    %v329 = vld [vmem:[%s328] ss:$8 sm:$0xf0]
    %vm330 = vcmask 1047556
    %v331 = vsel %vm330, %v329, %v327
    %vm332 = vcmask 64512
    %s333 = scalar_lea.vmem %s1, 8
    %334 = vst.msk [vmem:[%s333] sm:$0xff] %vm332, %v331
    %s335 = scalar_lea.vmem [#allocation0], 128
    %v336 = vld [vmem:[%s335] ss:$8 sm:$0xf]
    %s337 = scalar_lea.vmem [#allocation0], 128
    %v338 = vld [vmem:[%s337] ss:$8 sm:$0xf0]
    %vm339 = vcmask 1047556
    %v340 = vsel %vm339, %v338, %v336
    %vm341 = vcmask 64512
    %s342 = scalar_lea.vmem %s1, 16
    %343 = vst.msk [vmem:[%s342] sm:$0xff] %vm341, %v340
    %s344 = scalar_lea.vmem [#allocation0], 192
    %v345 = vld [vmem:[%s344] ss:$8 sm:$0xf]
    %s346 = scalar_lea.vmem [#allocation0], 192
    %v347 = vld [vmem:[%s346] ss:$8 sm:$0xf0]
    %vm348 = vcmask 1047556
    %v349 = vsel %vm348, %v347, %v345
    %vm350 = vcmask 64512
    %s351 = scalar_lea.vmem %s1, 24
    %352 = vst.msk [vmem:[%s351] sm:$0xff] %vm350, %v349
    %s353 = scalar_lea.vmem [#allocation0], 256
    %v354 = vld [vmem:[%s353] ss:$8 sm:$0xf]
    %s355 = scalar_lea.vmem [#allocation0], 256
    %v356 = vld [vmem:[%s355] ss:$8 sm:$0xf0]
    %vm357 = vcmask 1047556
    %v358 = vsel %vm357, %v356, %v354
    %vm359 = vcmask 64512
    %s360 = scalar_lea.vmem %s1, 32
    %361 = vst.msk [vmem:[%s360] sm:$0xff] %vm359, %v358
    %s362 = scalar_lea.vmem [#allocation0], 320
    %v363 = vld [vmem:[%s362] ss:$8 sm:$0xf]
    %s364 = scalar_lea.vmem [#allocation0], 320
    %v365 = vld [vmem:[%s364] ss:$8 sm:$0xf0]
    %vm366 = vcmask 1047556
    %v367 = vsel %vm366, %v365, %v363
    %vm368 = vcmask 64512
    %s369 = scalar_lea.vmem %s1, 40
    %370 = vst.msk [vmem:[%s369] sm:$0xff] %vm368, %v367
    %s371 = scalar_lea.vmem [#allocation0], 384
    %v372 = vld [vmem:[%s371] ss:$8 sm:$0xf]
    %s373 = scalar_lea.vmem [#allocation0], 384
    %v374 = vld [vmem:[%s373] ss:$8 sm:$0xf0]
    %vm375 = vcmask 1047556
    %v376 = vsel %vm375, %v374, %v372
    %vm377 = vcmask 64512
    %s378 = scalar_lea.vmem %s1, 48
    %379 = vst.msk [vmem:[%s378] sm:$0xff] %vm377, %v376
    %s380 = scalar_lea.vmem [#allocation0], 448
    %v381 = vld [vmem:[%s380] ss:$8 sm:$0xf]
    %s382 = scalar_lea.vmem [#allocation0], 448
    %v383 = vld [vmem:[%s382] ss:$8 sm:$0xf0]
    %vm384 = vcmask 1047556
    %v385 = vsel %vm384, %v383, %v381
    %vm386 = vcmask 64512
    %s387 = scalar_lea.vmem %s1, 56
    %388 = vst.msk [vmem:[%s387] sm:$0xff] %vm386, %v385
    %s389 = scalar_lea.vmem [#allocation0], 1
    %v390 = vld [vmem:[%s389] ss:$8 sm:$0xf]
    %s391 = scalar_lea.vmem [#allocation0], 1
    %v392 = vld [vmem:[%s391] ss:$8 sm:$0xf0]
    %vm393 = vcmask 1047556
    %v394 = vsel %vm393, %v392, %v390
    %395 = vrot.lane.b32.xlu0 %v394, 8
    %v396 = vpop.permute.xlu0 %395
    %vm397 = vcmask 130112
    %398 = vst.msk [vmem:[%s1] sm:$0xff] %vm397, %v396
    %s399 = scalar_lea.vmem [#allocation0], 257
    %v400 = vld [vmem:[%s399] ss:$8 sm:$0xf]
    %s401 = scalar_lea.vmem [#allocation0], 257
    %v402 = vld [vmem:[%s401] ss:$8 sm:$0xf0]
    %vm403 = vcmask 1047556
    %v404 = vsel %vm403, %v402, %v400
    %405 = vrot.lane.b32.xlu0 %v404, 8
    %v406 = vpop.permute.xlu0 %405
    %vm407 = vcmask 130112
    %s408 = scalar_lea.vmem %s1, 32
    %409 = vst.msk [vmem:[%s408] sm:$0xff] %vm407, %v406
    %s410 = scalar_lea.vmem [#allocation0], 65
    %v411 = vld [vmem:[%s410] ss:$8 sm:$0xf]
    %s412 = scalar_lea.vmem [#allocation0], 65
    %v413 = vld [vmem:[%s412] ss:$8 sm:$0xf0]
    %vm414 = vcmask 1047556
    %v415 = vsel %vm414, %v413, %v411
    %416 = vrot.lane.b32.xlu0 %v415, 8
    %v417 = vpop.permute.xlu0 %416
    %vm418 = vcmask 130112
    %s419 = scalar_lea.vmem %s1, 8
    %420 = vst.msk [vmem:[%s419] sm:$0xff] %vm418, %v417
    %s421 = scalar_lea.vmem [#allocation0], 321
    %v422 = vld [vmem:[%s421] ss:$8 sm:$0xf]
    %s423 = scalar_lea.vmem [#allocation0], 321
    %v424 = vld [vmem:[%s423] ss:$8 sm:$0xf0]
    %vm425 = vcmask 1047556
    %v426 = vsel %vm425, %v424, %v422
    %427 = vrot.lane.b32.xlu0 %v426, 8
    %v428 = vpop.permute.xlu0 %427
    %vm429 = vcmask 130112
    %s430 = scalar_lea.vmem %s1, 40
    %431 = vst.msk [vmem:[%s430] sm:$0xff] %vm429, %v428
    %s432 = scalar_lea.vmem [#allocation0], 129
    %v433 = vld [vmem:[%s432] ss:$8 sm:$0xf]
    %s434 = scalar_lea.vmem [#allocation0], 129
    %v435 = vld [vmem:[%s434] ss:$8 sm:$0xf0]
    %vm436 = vcmask 1047556
    %v437 = vsel %vm436, %v435, %v433
    %438 = vrot.lane.b32.xlu0 %v437, 8
    %v439 = vpop.permute.xlu0 %438
    %vm440 = vcmask 130112
    %s441 = scalar_lea.vmem %s1, 16
    %442 = vst.msk [vmem:[%s441] sm:$0xff] %vm440, %v439
    %s443 = scalar_lea.vmem [#allocation0], 385
    %v444 = vld [vmem:[%s443] ss:$8 sm:$0xf]
    %s445 = scalar_lea.vmem [#allocation0], 385
    %v446 = vld [vmem:[%s445] ss:$8 sm:$0xf0]
    %vm447 = vcmask 1047556
    %v448 = vsel %vm447, %v446, %v444
    %449 = vrot.lane.b32.xlu0 %v448, 8
    %v450 = vpop.permute.xlu0 %449
    %vm451 = vcmask 130112
    %s452 = scalar_lea.vmem %s1, 48
    %453 = vst.msk [vmem:[%s452] sm:$0xff] %vm451, %v450
    %s454 = scalar_lea.vmem [#allocation0], 193
    %v455 = vld [vmem:[%s454] ss:$8 sm:$0xf]
    %s456 = scalar_lea.vmem [#allocation0], 193
    %v457 = vld [vmem:[%s456] ss:$8 sm:$0xf0]
    %vm458 = vcmask 1047556
    %v459 = vsel %vm458, %v457, %v455
    %460 = vrot.lane.b32.xlu0 %v459, 8
    %v461 = vpop.permute.xlu0 %460
    %vm462 = vcmask 130112
    %s463 = scalar_lea.vmem %s1, 24
    %464 = vst.msk [vmem:[%s463] sm:$0xff] %vm462, %v461
    %s465 = scalar_lea.vmem [#allocation0], 449
    %v466 = vld [vmem:[%s465] ss:$8 sm:$0xf]
    %s467 = scalar_lea.vmem [#allocation0], 449
    %v468 = vld [vmem:[%s467] ss:$8 sm:$0xf0]
    %vm469 = vcmask 1047556
    %v470 = vsel %vm469, %v468, %v466
    %471 = vrot.lane.b32.xlu0 %v470, 8
    %v472 = vpop.permute.xlu0 %471
    %vm473 = vcmask 130112
    %s474 = scalar_lea.vmem %s1, 56
    %475 = vst.msk [vmem:[%s474] sm:$0xff] %vm473, %v472

// kernel: self_attention_forward.1
$region0: #{self_attention_forward.1}
  #allocation0 [shape = 'u32[]', space=smem, size = 0x4, offset = 0x4, fixed_abs, tag = 'smem constant byte address 0x4 - core index']
  #allocation1 [shape = 'u32[144,128]{1,0:T(1,128)}', space=vmem, size = 0x12000, scoped, tag = 'internal scratch']
  %s0 = inlined_call_operand.vmem [shape: f32[16,32], index: 0, kind: input, shape index: {}]
  %s1 = inlined_call_operand.vmem [shape: f32[4,16,16], index: 1, kind: input, shape index: {}]
  %s2 = inlined_call_operand.vmem [shape: f32[32,128], index: 2, kind: input, shape index: {}]
  %s3 = inlined_call_operand.hbm [shape: f32[16,32], index: 3, kind: output, shape index: {}]
  %s4 = sld [smem:[#allocation0]]
  $region22: #{self_attention_forward.1} parent=0
    _
  %s6 = ssub.s32 1, %s4
  %s7 = scalar_select 0, %s6, %s4
  $region1: #{self_attention_forward.1} parent=0
    #allocation2 [shape = 'u8[8192]{0}', space=vmem, size = 0x2000, scoped, tag = 'output window, operand 0, single buffered']
    #allocation3 [shape = 's32[1]{0}', space=sflag, size = 0x4, scoped, tag = 'scoped memory for self_attention_forward.1']
    %8 = vsyncpa [#allocation3], 0
    // Predicated region
    $region2: #{self_attention_forward.1} parent=1 // pred_check
      _
    $region3: #{self_attention_forward.1} parent=1 // pred_check_branch
      %10 = sbr.rel (0) target = $region5
    $region4: #{self_attention_forward.1} parent=1 // pred_region
      _
    $region5: #{self_attention_forward.1} parent=1 // pred_fallthru
      _
    // Predicated region
    $region6: #{self_attention_forward.1} parent=1 // pred_check
      _
    $region7: #{self_attention_forward.1} parent=1 // pred_check_branch
      %12 = sbr.rel (0) target = $region9
    $region8: #{self_attention_forward.1} parent=1 // pred_region
      _
    $region9: #{self_attention_forward.1} parent=1 // pred_fallthru
      _
    // Predicated region
    $region10: #{self_attention_forward.1} parent=1 // pred_check
      _
    $region11: #{self_attention_forward.1} parent=1 // pred_check_branch
      %14 = sbr.rel (0) target = $region13
    $region12: #{self_attention_forward.1} parent=1 // pred_region
      _
    $region13: #{self_attention_forward.1} parent=1 // pred_fallthru
      _
    %v15 = vld [vmem:[%s0] sm:$0xff]
    %v16 = vld [vmem:[%s0 + $0x8] sm:$0xff]
    %v17 = vld [vmem:[%s2] sm:$0xff]
    %v18 = vld [vmem:[%s2 + $0x8] sm:$0xff]
    %v19 = vld [vmem:[%s2 + $0x10] sm:$0xff]
    %v20 = vld [vmem:[%s2 + $0x18] sm:$0xff]
    %v21 = vmul.f32 %v15, %v15
    %v22 = vmul.f32 %v16, %v16
    %vm23 = vcmask 261120
    %v24 = vsel %vm23, %v21, 0.0
    %25 = vadd.xlane.f32.xlu0 %v24
    %v26 = vpop.xlane.xlu0 %25
    %v27 = vsel %vm23, %v22, 0.0
    %28 = vadd.xlane.f32.xlu0 %v27
    %v29 = vpop.xlane.xlu0 %28
    %v30 = vrcp.pop 32.0
    %v31 = vmul.f32 %v26, %v30
    %v32 = vmul.f32 %v29, %v30
    %v33 = vadd.f32 %v31, 1e-06
    %v34 = vadd.f32 %v32, 1e-06
    %v35 = vrsqrt.pop %v33
    %v36 = vrsqrt.pop %v34
    %v37 = vmul.f32 %v15, %v35
    %v38 = vmul.f32 %v16, %v36
    %v40 = vsel %vm23, %v37, 0
    %v43 = vsel %vm23, %v38, 0
    %45 = vmatprep.subr.mxu0 0.0
    %46 = vmatpush1.msra.mxu0 %v17
    %47 = vmatprep.subr.mxu0 0.0
    %48 = vmatpush1.msra.mxu0 %v18
    %49 = vmatprep.subr.mxu0 0.0
    %50 = vmatpush1.msra.mxu0 %v19
    %51 = vmatprep.subr.mxu0 0.0
    %52 = vmatpush1.msra.mxu0 %v20
    %53 = vmatprep.subr.mxu0 0.0
    %54 = vmatpush1.msra.mxu0 0.0
    %55 = vmatprep.subr.mxu0 0.0
    %56 = vmatpush1.msra.mxu0 0.0
    %57 = vmatprep.subr.mxu0 0.0
    %58 = vmatpush1.msra.mxu0 0.0
    %59 = vmatprep.subr.mxu0 0.0
    %60 = vmatpush1.msra.mxu0 0.0
    %61 = vmatprep.subr.mxu0 0.0
    %62 = vmatpush1.msra.mxu0 0.0
    %63 = vmatprep.subr.mxu0 0.0
    %64 = vmatpush1.msra.mxu0 0.0
    %65 = vmatprep.subr.mxu0 0.0
    %66 = vmatpush1.msra.mxu0 0.0
    %67 = vmatprep.subr.mxu0 0.0
    %68 = vmatpush1.msra.mxu0 0.0
    %69 = vmatprep.subr.mxu0 0.0
    %70 = vmatpush1.msra.mxu0 0.0
    %71 = vmatprep.subr.mxu0 0.0
    %72 = vmatpush1.msra.mxu0 0.0
    %73 = vmatprep.subr.mxu0 0.0
    %74 = vmatpush1.msra.mxu0 0.0
    %75 = vmatprep.subr.mxu0 0.0
    %76 = vmatpush1.msra.mxu0 0.0
    %77 = vmatprep.subr.mxu0 0.0
    %78 = vmatpush1.msra.mxu0 0.0
    %79 = vmatprep.subr.mxu0 0.0
    %80 = vmatpush1.msra.mxu0 0.0
    %81 = vmatprep.subr.mxu0 0.0
    %82 = vmatpush1.msra.mxu0 0.0
    %83 = vmatprep.subr.mxu0 0.0
    %84 = vmatpush1.msra.mxu0 0.0
    %85 = vmatprep.subr.mxu0 0.0
    %86 = vmatpush1.msra.mxu0 0.0
    %87 = vmatprep.subr.mxu0 0.0
    %88 = vmatpush1.msra.mxu0 0.0
    %89 = vmatprep.subr.mxu0 0.0
    %90 = vmatpush1.msra.mxu0 0.0
    %91 = vmatprep.subr.mxu0 0.0
    %92 = vmatpush1.msra.mxu0 0.0
    %93 = vmatprep.subr.mxu0 0.0
    %94 = vmatpush1.msra.mxu0 0.0
    %95 = vmatprep.subr.mxu0 0.0
    %96 = vmatpush1.msra.mxu0 0.0
    %97 = vmatprep.subr.mxu0 0.0
    %98 = vmatpush1.msra.mxu0 0.0
    %99 = vmatprep.subr.mxu0 0.0
    %100 = vmatpush1.msra.mxu0 0.0
    %101 = vmatprep.subr.mxu0 0.0
    %102 = vmatpush1.msra.mxu0 0.0
    %103 = vmatprep.subr.mxu0 0.0
    %104 = vmatpush1.msra.mxu0 0.0
    %105 = vmatprep.subr.mxu0 0.0
    %106 = vmatpush1.msra.mxu0 0.0
    %107 = vmatprep.subr.mxu0 0.0
    %108 = vmatpush1.msra.mxu0 0.0
    %109 = vmatprep.mubr.f32.mxu0 0.0
    %110 = vmatmul.mubr.f32.gmra.mrb[0].mxu0 %v40
    %v111 = vpop.f32.mrb[0].mxu0
    %v112 = vadd.f32 0.0, %v111
    %v113 = vpop.f32.mrb[0].mxu0
    %114 = vmatprep.mubr.f32.mxu0 0.0
    %115 = vmatmul.mubr.f32.gmra.mrb[0].mxu0 %v43
    %v116 = vpop.f32.mrb[0].mxu0
    %v117 = vadd.f32 0.0, %v116
    %v118 = vpop.f32.mrb[0].mxu0
    %119 = vdwg.mxu0
    %122 = vrot.lane.b32.xlu0 %v112, 120
    %v123 = vpop.permute.xlu0 %122
    %124 = vrot.lane.b32.xlu0 %v117, 120
    %v125 = vpop.permute.xlu0 %124
    %126 = vrot.lane.b32.xlu0 %v112, 112
    %v127 = vpop.permute.xlu0 %126
    %128 = vrot.lane.b32.xlu0 %v117, 112
    %v129 = vpop.permute.xlu0 %128
    %130 = vrot.lane.b32.xlu0 %v112, 104
    %v131 = vpop.permute.xlu0 %130
    %132 = vrot.lane.b32.xlu0 %v117, 104
    %v133 = vpop.permute.xlu0 %132
    %v134 = vld [vmem:[%s1] sm:$0xff]
    %v135 = vld [vmem:[%s1 + $0x8] sm:$0xff]
    %v136 = vld [vmem:[%s1 + $0x10] sm:$0xff]
    %v137 = vld [vmem:[%s1 + $0x18] sm:$0xff]
    %v138 = vld [vmem:[%s1 + $0x20] sm:$0xff]
    %v139 = vld [vmem:[%s1 + $0x28] sm:$0xff]
    %v140 = vld [vmem:[%s1 + $0x30] sm:$0xff]
    %v141 = vld [vmem:[%s1 + $0x38] sm:$0xff]
    %142 = vrot.lane.b32.xlu0 %v112, 96
    %v143 = vpop.permute.xlu0 %142
    %144 = vrot.lane.b32.xlu0 %v117, 96
    %v145 = vpop.permute.xlu0 %144
    %vm146 = vcmask 64512
    %v147 = vsel %vm146, %v112, 0
    %v149 = vsel %vm146, %v117, 0
    %v151 = vsel %vm146, %v143, 0
    %v153 = vsel %vm146, %v145, 0
    %155 = vmatprep.subr.mxu0 0.0
    %156 = vmatpush1.xpose.msra.mxu0 %v151
    %157 = vmatprep.subr.mxu0 0.0
    %158 = vmatpush1.xpose.msra.mxu0 %v153
    %159 = vmatprep.subr.mxu0 0.0
    %160 = vmatpush1.xpose.msra.mxu0 0.0
    %161 = vmatprep.subr.mxu0 0.0
    %162 = vmatpush1.xpose.msra.mxu0 0.0
    %163 = vmatprep.subr.mxu0 0.0
    %164 = vmatpush1.xpose.msra.mxu0 0.0
    %165 = vmatprep.subr.mxu0 0.0
    %166 = vmatpush1.xpose.msra.mxu0 0.0
    %167 = vmatprep.subr.mxu0 0.0
    %168 = vmatpush1.xpose.msra.mxu0 0.0
    %169 = vmatprep.subr.mxu0 0.0
    %170 = vmatpush1.xpose.msra.mxu0 0.0
    %171 = vmatprep.subr.mxu0 0.0
    %172 = vmatpush1.xpose.msra.mxu0 0.0
    %173 = vmatprep.subr.mxu0 0.0
    %174 = vmatpush1.xpose.msra.mxu0 0.0
    %175 = vmatprep.subr.mxu0 0.0
    %176 = vmatpush1.xpose.msra.mxu0 0.0
    %177 = vmatprep.subr.mxu0 0.0
    %178 = vmatpush1.xpose.msra.mxu0 0.0
    %179 = vmatprep.subr.mxu0 0.0
    %180 = vmatpush1.xpose.msra.mxu0 0.0
    %181 = vmatprep.subr.mxu0 0.0
    %182 = vmatpush1.xpose.msra.mxu0 0.0
    %183 = vmatprep.subr.mxu0 0.0
    %184 = vmatpush1.xpose.msra.mxu0 0.0
    %185 = vmatprep.subr.mxu0 0.0
    %186 = vmatpush1.xpose.msra.mxu0 0.0
    %187 = vmatprep.subr.mxu0 0.0
    %188 = vmatpush1.xpose.msra.mxu0 0.0
    %189 = vmatprep.subr.mxu0 0.0
    %190 = vmatpush1.xpose.msra.mxu0 0.0
    %191 = vmatprep.subr.mxu0 0.0
    %192 = vmatpush1.xpose.msra.mxu0 0.0
    %193 = vmatprep.subr.mxu0 0.0
    %194 = vmatpush1.xpose.msra.mxu0 0.0
    %195 = vmatprep.subr.mxu0 0.0
    %196 = vmatpush1.xpose.msra.mxu0 0.0
    %197 = vmatprep.subr.mxu0 0.0
    %198 = vmatpush1.xpose.msra.mxu0 0.0
    %199 = vmatprep.subr.mxu0 0.0
    %200 = vmatpush1.xpose.msra.mxu0 0.0
    %201 = vmatprep.subr.mxu0 0.0
    %202 = vmatpush1.xpose.msra.mxu0 0.0
    %203 = vmatprep.subr.mxu0 0.0
    %204 = vmatpush1.xpose.msra.mxu0 0.0
    %205 = vmatprep.subr.mxu0 0.0
    %206 = vmatpush1.xpose.msra.mxu0 0.0
    %207 = vmatprep.subr.mxu0 0.0
    %208 = vmatpush1.xpose.msra.mxu0 0.0
    %209 = vmatprep.subr.mxu0 0.0
    %210 = vmatpush1.xpose.msra.mxu0 0.0
    %211 = vmatprep.subr.mxu0 0.0
    %212 = vmatpush1.xpose.msra.mxu0 0.0
    %213 = vmatprep.subr.mxu0 0.0
    %214 = vmatpush1.xpose.msra.mxu0 0.0
    %215 = vmatprep.subr.mxu0 0.0
    %216 = vmatpush1.xpose.msra.mxu0 0.0
    %217 = vmatprep.subr.mxu0 0.0
    %218 = vmatpush1.xpose.msra.mxu0 0.0
    %219 = vmatprep.mubr.f32.mxu0 0.0
    %220 = vmatmul.mubr.f32.gmra.mrb[0].mxu0 %v147
    %v221 = vpop.f32.mrb[0].mxu0
    %v222 = vadd.f32 %v134, %v221
    %v223 = vpop.f32.mrb[0].mxu0
    %224 = vmatprep.mubr.f32.mxu0 0.0
    %225 = vmatmul.mubr.f32.gmra.mrb[0].mxu0 %v149
    %v226 = vpop.f32.mrb[0].mxu0
    %v227 = vadd.f32 %v135, %v226
    %v228 = vpop.f32.mrb[0].mxu0
    %229 = vdwg.mxu0
    %230 = vrot.lane.b32.xlu0 %v123, 96
    %v231 = vpop.permute.xlu0 %230
    %232 = vrot.lane.b32.xlu0 %v125, 96
    %v233 = vpop.permute.xlu0 %232
    %v234 = vsel %vm146, %v123, 0
    %v236 = vsel %vm146, %v125, 0
    %v238 = vsel %vm146, %v231, 0
    %v240 = vsel %vm146, %v233, 0
    %242 = vmatprep.subr.mxu0 0.0
    %243 = vmatpush1.xpose.msra.mxu0 %v238
    %244 = vmatprep.subr.mxu0 0.0
    %245 = vmatpush1.xpose.msra.mxu0 %v240
    %246 = vmatprep.subr.mxu0 0.0
    %247 = vmatpush1.xpose.msra.mxu0 0.0
    %248 = vmatprep.subr.mxu0 0.0
    %249 = vmatpush1.xpose.msra.mxu0 0.0
    %250 = vmatprep.subr.mxu0 0.0
    %251 = vmatpush1.xpose.msra.mxu0 0.0
    %252 = vmatprep.subr.mxu0 0.0
    %253 = vmatpush1.xpose.msra.mxu0 0.0
    %254 = vmatprep.subr.mxu0 0.0
    %255 = vmatpush1.xpose.msra.mxu0 0.0
    %256 = vmatprep.subr.mxu0 0.0
    %257 = vmatpush1.xpose.msra.mxu0 0.0
    %258 = vmatprep.subr.mxu0 0.0
    %259 = vmatpush1.xpose.msra.mxu0 0.0
    %260 = vmatprep.subr.mxu0 0.0
    %261 = vmatpush1.xpose.msra.mxu0 0.0
    %262 = vmatprep.subr.mxu0 0.0
    %263 = vmatpush1.xpose.msra.mxu0 0.0
    %264 = vmatprep.subr.mxu0 0.0
    %265 = vmatpush1.xpose.msra.mxu0 0.0
    %266 = vmatprep.subr.mxu0 0.0
    %267 = vmatpush1.xpose.msra.mxu0 0.0
    %268 = vmatprep.subr.mxu0 0.0
    %269 = vmatpush1.xpose.msra.mxu0 0.0
    %270 = vmatprep.subr.mxu0 0.0
    %271 = vmatpush1.xpose.msra.mxu0 0.0
    %272 = vmatprep.subr.mxu0 0.0
    %273 = vmatpush1.xpose.msra.mxu0 0.0
    %274 = vmatprep.subr.mxu0 0.0
    %275 = vmatpush1.xpose.msra.mxu0 0.0
    %276 = vmatprep.subr.mxu0 0.0
    %277 = vmatpush1.xpose.msra.mxu0 0.0
    %278 = vmatprep.subr.mxu0 0.0
    %279 = vmatpush1.xpose.msra.mxu0 0.0
    %280 = vmatprep.subr.mxu0 0.0
    %281 = vmatpush1.xpose.msra.mxu0 0.0
    %282 = vmatprep.subr.mxu0 0.0
    %283 = vmatpush1.xpose.msra.mxu0 0.0
    %284 = vmatprep.subr.mxu0 0.0
    %285 = vmatpush1.xpose.msra.mxu0 0.0
    %286 = vmatprep.subr.mxu0 0.0
    %287 = vmatpush1.xpose.msra.mxu0 0.0
    %288 = vmatprep.subr.mxu0 0.0
    %289 = vmatpush1.xpose.msra.mxu0 0.0
    %290 = vmatprep.subr.mxu0 0.0
    %291 = vmatpush1.xpose.msra.mxu0 0.0
    %292 = vmatprep.subr.mxu0 0.0
    %293 = vmatpush1.xpose.msra.mxu0 0.0
    %294 = vmatprep.subr.mxu0 0.0
    %295 = vmatpush1.xpose.msra.mxu0 0.0
    %296 = vmatprep.subr.mxu0 0.0
    %297 = vmatpush1.xpose.msra.mxu0 0.0
    %298 = vmatprep.subr.mxu0 0.0
    %299 = vmatpush1.xpose.msra.mxu0 0.0
    %300 = vmatprep.subr.mxu0 0.0
    %301 = vmatpush1.xpose.msra.mxu0 0.0
    %302 = vmatprep.subr.mxu0 0.0
    %303 = vmatpush1.xpose.msra.mxu0 0.0
    %304 = vmatprep.subr.mxu0 0.0
    %305 = vmatpush1.xpose.msra.mxu0 0.0
    %306 = vmatprep.mubr.f32.mxu0 0.0
    %307 = vmatmul.mubr.f32.gmra.mrb[0].mxu0 %v234
    %v308 = vpop.f32.mrb[0].mxu0
    %v309 = vadd.f32 %v136, %v308
    %v310 = vpop.f32.mrb[0].mxu0
    %311 = vmatprep.mubr.f32.mxu0 0.0
    %312 = vmatmul.mubr.f32.gmra.mrb[0].mxu0 %v236
    %v313 = vpop.f32.mrb[0].mxu0
    %v314 = vadd.f32 %v137, %v313
    %v315 = vpop.f32.mrb[0].mxu0
    %316 = vdwg.mxu0
    %317 = vrot.lane.b32.xlu0 %v127, 96
    %v318 = vpop.permute.xlu0 %317
    %319 = vrot.lane.b32.xlu0 %v129, 96
    %v320 = vpop.permute.xlu0 %319
    %v321 = vsel %vm146, %v127, 0
    %v323 = vsel %vm146, %v129, 0
    %v325 = vsel %vm146, %v318, 0
    %v327 = vsel %vm146, %v320, 0
    %329 = vmatprep.subr.mxu0 0.0
    %330 = vmatpush1.xpose.msra.mxu0 %v325
    %331 = vmatprep.subr.mxu0 0.0
    %332 = vmatpush1.xpose.msra.mxu0 %v327
    %333 = vmatprep.subr.mxu0 0.0
    %334 = vmatpush1.xpose.msra.mxu0 0.0
    %335 = vmatprep.subr.mxu0 0.0
    %336 = vmatpush1.xpose.msra.mxu0 0.0
    %337 = vmatprep.subr.mxu0 0.0
    %338 = vmatpush1.xpose.msra.mxu0 0.0
    %339 = vmatprep.subr.mxu0 0.0
    %340 = vmatpush1.xpose.msra.mxu0 0.0
    %341 = vmatprep.subr.mxu0 0.0
    %342 = vmatpush1.xpose.msra.mxu0 0.0
    %343 = vmatprep.subr.mxu0 0.0
    %344 = vmatpush1.xpose.msra.mxu0 0.0
    %345 = vmatprep.subr.mxu0 0.0
    %346 = vmatpush1.xpose.msra.mxu0 0.0
    %347 = vmatprep.subr.mxu0 0.0
    %348 = vmatpush1.xpose.msra.mxu0 0.0
    %349 = vmatprep.subr.mxu0 0.0
    %350 = vmatpush1.xpose.msra.mxu0 0.0
    %351 = vmatprep.subr.mxu0 0.0
    %352 = vmatpush1.xpose.msra.mxu0 0.0
    %353 = vmatprep.subr.mxu0 0.0
    %354 = vmatpush1.xpose.msra.mxu0 0.0
    %355 = vmatprep.subr.mxu0 0.0
    %356 = vmatpush1.xpose.msra.mxu0 0.0
    %357 = vmatprep.subr.mxu0 0.0
    %358 = vmatpush1.xpose.msra.mxu0 0.0
    %359 = vmatprep.subr.mxu0 0.0
    %360 = vmatpush1.xpose.msra.mxu0 0.0
    %361 = vmatprep.subr.mxu0 0.0
    %362 = vmatpush1.xpose.msra.mxu0 0.0
    %363 = vmatprep.subr.mxu0 0.0
    %364 = vmatpush1.xpose.msra.mxu0 0.0
    %365 = vmatprep.subr.mxu0 0.0
    %366 = vmatpush1.xpose.msra.mxu0 0.0
    %367 = vmatprep.subr.mxu0 0.0
    %368 = vmatpush1.xpose.msra.mxu0 0.0
    %369 = vmatprep.subr.mxu0 0.0
    %370 = vmatpush1.xpose.msra.mxu0 0.0
    %371 = vmatprep.subr.mxu0 0.0
    %372 = vmatpush1.xpose.msra.mxu0 0.0
    %373 = vmatprep.subr.mxu0 0.0
    %374 = vmatpush1.xpose.msra.mxu0 0.0
    %375 = vmatprep.subr.mxu0 0.0
    %376 = vmatpush1.xpose.msra.mxu0 0.0
    %377 = vmatprep.subr.mxu0 0.0
    %378 = vmatpush1.xpose.msra.mxu0 0.0
    %379 = vmatprep.subr.mxu0 0.0
    %380 = vmatpush1.xpose.msra.mxu0 0.0
    %381 = vmatprep.subr.mxu0 0.0
    %382 = vmatpush1.xpose.msra.mxu0 0.0
    %383 = vmatprep.subr.mxu0 0.0
    %384 = vmatpush1.xpose.msra.mxu0 0.0
    %385 = vmatprep.subr.mxu0 0.0
    %386 = vmatpush1.xpose.msra.mxu0 0.0
    %387 = vmatprep.subr.mxu0 0.0
    %388 = vmatpush1.xpose.msra.mxu0 0.0
    %389 = vmatprep.subr.mxu0 0.0
    %390 = vmatpush1.xpose.msra.mxu0 0.0
    %391 = vmatprep.subr.mxu0 0.0
    %392 = vmatpush1.xpose.msra.mxu0 0.0
    %393 = vmatprep.mubr.f32.mxu0 0.0
    %394 = vmatmul.mubr.f32.gmra.mrb[0].mxu0 %v321
    %v395 = vpop.f32.mrb[0].mxu0
    %v396 = vadd.f32 %v138, %v395
    %v397 = vpop.f32.mrb[0].mxu0
    %398 = vmatprep.mubr.f32.mxu0 0.0
    %399 = vmatmul.mubr.f32.gmra.mrb[0].mxu0 %v323
    %v400 = vpop.f32.mrb[0].mxu0
    %v401 = vadd.f32 %v139, %v400
    %v402 = vpop.f32.mrb[0].mxu0
    %403 = vdwg.mxu0
    %404 = vrot.lane.b32.xlu0 %v131, 96
    %v405 = vpop.permute.xlu0 %404
    %406 = vrot.lane.b32.xlu0 %v133, 96
    %v407 = vpop.permute.xlu0 %406
    %v408 = vsel %vm146, %v131, 0
    %v410 = vsel %vm146, %v133, 0
    %v412 = vsel %vm146, %v405, 0
    %v414 = vsel %vm146, %v407, 0
    %416 = vmatprep.subr.mxu0 0.0
    %417 = vmatpush1.xpose.msra.mxu0 %v412
    %418 = vmatprep.subr.mxu0 0.0
    %419 = vmatpush1.xpose.msra.mxu0 %v414
    %420 = vmatprep.subr.mxu0 0.0
    %421 = vmatpush1.xpose.msra.mxu0 0.0
    %422 = vmatprep.subr.mxu0 0.0
    %423 = vmatpush1.xpose.msra.mxu0 0.0
    %424 = vmatprep.subr.mxu0 0.0
    %425 = vmatpush1.xpose.msra.mxu0 0.0
    %426 = vmatprep.subr.mxu0 0.0
    %427 = vmatpush1.xpose.msra.mxu0 0.0
    %428 = vmatprep.subr.mxu0 0.0
    %429 = vmatpush1.xpose.msra.mxu0 0.0
    %430 = vmatprep.subr.mxu0 0.0
    %431 = vmatpush1.xpose.msra.mxu0 0.0
    %432 = vmatprep.subr.mxu0 0.0
    %433 = vmatpush1.xpose.msra.mxu0 0.0
    %434 = vmatprep.subr.mxu0 0.0
    %435 = vmatpush1.xpose.msra.mxu0 0.0
    %436 = vmatprep.subr.mxu0 0.0
    %437 = vmatpush1.xpose.msra.mxu0 0.0
    %438 = vmatprep.subr.mxu0 0.0
    %439 = vmatpush1.xpose.msra.mxu0 0.0
    %440 = vmatprep.subr.mxu0 0.0
    %441 = vmatpush1.xpose.msra.mxu0 0.0
    %442 = vmatprep.subr.mxu0 0.0
    %443 = vmatpush1.xpose.msra.mxu0 0.0
    %444 = vmatprep.subr.mxu0 0.0
    %445 = vmatpush1.xpose.msra.mxu0 0.0
    %446 = vmatprep.subr.mxu0 0.0
    %447 = vmatpush1.xpose.msra.mxu0 0.0
    %448 = vmatprep.subr.mxu0 0.0
    %449 = vmatpush1.xpose.msra.mxu0 0.0
    %450 = vmatprep.subr.mxu0 0.0
    %451 = vmatpush1.xpose.msra.mxu0 0.0
    %452 = vmatprep.subr.mxu0 0.0
    %453 = vmatpush1.xpose.msra.mxu0 0.0
    %454 = vmatprep.subr.mxu0 0.0
    %455 = vmatpush1.xpose.msra.mxu0 0.0
    %456 = vmatprep.subr.mxu0 0.0
    %457 = vmatpush1.xpose.msra.mxu0 0.0
    %458 = vmatprep.subr.mxu0 0.0
    %459 = vmatpush1.xpose.msra.mxu0 0.0
    %460 = vmatprep.subr.mxu0 0.0
    %461 = vmatpush1.xpose.msra.mxu0 0.0
    %462 = vmatprep.subr.mxu0 0.0
    %463 = vmatpush1.xpose.msra.mxu0 0.0
    %464 = vmatprep.subr.mxu0 0.0
    %465 = vmatpush1.xpose.msra.mxu0 0.0
    %466 = vmatprep.subr.mxu0 0.0
    %467 = vmatpush1.xpose.msra.mxu0 0.0
    %468 = vmatprep.subr.mxu0 0.0
    %469 = vmatpush1.xpose.msra.mxu0 0.0
    %470 = vmatprep.subr.mxu0 0.0
    %471 = vmatpush1.xpose.msra.mxu0 0.0
    %472 = vmatprep.subr.mxu0 0.0
    %473 = vmatpush1.xpose.msra.mxu0 0.0
    %474 = vmatprep.subr.mxu0 0.0
    %475 = vmatpush1.xpose.msra.mxu0 0.0
    %476 = vmatprep.subr.mxu0 0.0
    %477 = vmatpush1.xpose.msra.mxu0 0.0
    %478 = vmatprep.subr.mxu0 0.0
    %479 = vmatpush1.xpose.msra.mxu0 0.0
    %480 = vmatprep.mubr.f32.mxu0 0.0
    %481 = vmatmul.mubr.f32.gmra.mrb[0].mxu0 %v408
    %v482 = vpop.f32.mrb[0].mxu0
    %v483 = vadd.f32 %v140, %v482
    %v484 = vpop.f32.mrb[0].mxu0
    %485 = vmatprep.mubr.f32.mxu0 0.0
    %486 = vmatmul.mubr.f32.gmra.mrb[0].mxu0 %v410
    %v487 = vpop.f32.mrb[0].mxu0
    %v488 = vadd.f32 %v141, %v487
    %v489 = vpop.f32.mrb[0].mxu0
    %490 = vdwg.mxu0
    %vm491 = vcmask 130048
    %v492 = vsel %vm491, %v222, -inf
    %493 = vmax.xlane.f32.xlu0 %v492
    %v494 = vpop.xlane.xlu0 %493
    %v495 = vsel %vm491, %v227, -inf
    %496 = vmax.xlane.f32.xlu0 %v495
    %v497 = vpop.xlane.xlu0 %496
    %v498 = vsel %vm491, %v309, -inf
    %499 = vmax.xlane.f32.xlu0 %v498
    %v500 = vpop.xlane.xlu0 %499
    %v501 = vsel %vm491, %v314, -inf
    %502 = vmax.xlane.f32.xlu0 %v501
    %v503 = vpop.xlane.xlu0 %502
    %v504 = vsel %vm491, %v396, -inf
    %505 = vmax.xlane.f32.xlu0 %v504
    %v506 = vpop.xlane.xlu0 %505
    %v507 = vsel %vm491, %v401, -inf
    %508 = vmax.xlane.f32.xlu0 %v507
    %v509 = vpop.xlane.xlu0 %508
    %v510 = vsel %vm491, %v483, -inf
    %511 = vmax.xlane.f32.xlu0 %v510
    %v512 = vpop.xlane.xlu0 %511
    %v513 = vsel %vm491, %v488, -inf
    %514 = vmax.xlane.f32.xlu0 %v513
    %v515 = vpop.xlane.xlu0 %514
    %v516 = vsub.f32 %v222, %v494
    %v517 = vsub.f32 %v227, %v497
    %v518 = vsub.f32 %v309, %v500
    %v519 = vsub.f32 %v314, %v503
    %v520 = vsub.f32 %v396, %v506
    %v521 = vsub.f32 %v401, %v509
    %v522 = vsub.f32 %v483, %v512
    %v523 = vsub.f32 %v488, %v515
    %v524 = vmul.f32 %v516, 1.442695
    %v525 = vpow.pop %v524
    %v526 = vmul.f32 %v517, 1.442695
    %v527 = vpow.pop %v526
    %v528 = vmul.f32 %v518, 1.442695
    %v529 = vpow.pop %v528
    %v530 = vmul.f32 %v519, 1.442695
    %v531 = vpow.pop %v530
    %v532 = vmul.f32 %v520, 1.442695
    %v533 = vpow.pop %v532
    %v534 = vmul.f32 %v521, 1.442695
    %v535 = vpow.pop %v534
    %v536 = vmul.f32 %v522, 1.442695
    %v537 = vpow.pop %v536
    %v538 = vmul.f32 %v523, 1.442695
    %v539 = vpow.pop %v538
    %v540 = vsel %vm491, %v525, 0.0
    %541 = vadd.xlane.f32.xlu0 %v540
    %v542 = vpop.xlane.xlu0 %541
    %v543 = vsel %vm491, %v527, 0.0
    %544 = vadd.xlane.f32.xlu0 %v543
    %v545 = vpop.xlane.xlu0 %544
    %v546 = vsel %vm491, %v529, 0.0
    %547 = vadd.xlane.f32.xlu0 %v546
    %v548 = vpop.xlane.xlu0 %547
    %v549 = vsel %vm491, %v531, 0.0
    %550 = vadd.xlane.f32.xlu0 %v549
    %v551 = vpop.xlane.xlu0 %550
    %v552 = vsel %vm491, %v533, 0.0
    %553 = vadd.xlane.f32.xlu0 %v552
    %v554 = vpop.xlane.xlu0 %553
    %v555 = vsel %vm491, %v535, 0.0
    %556 = vadd.xlane.f32.xlu0 %v555
    %v557 = vpop.xlane.xlu0 %556
    %v558 = vsel %vm491, %v537, 0.0
    %559 = vadd.xlane.f32.xlu0 %v558
    %v560 = vpop.xlane.xlu0 %559
    %v561 = vsel %vm491, %v539, 0.0
    %562 = vadd.xlane.f32.xlu0 %v561
    %v563 = vpop.xlane.xlu0 %562
    %v564 = vrcp.pop %v542
    %v565 = vrcp.pop %v545
    %v566 = vrcp.pop %v548
    %v567 = vrcp.pop %v551
    %v568 = vrcp.pop %v554
    %v569 = vrcp.pop %v557
    %v570 = vrcp.pop %v560
    %v571 = vrcp.pop %v563
    %v572 = vmul.f32 %v525, %v564
    %v573 = vmul.f32 %v527, %v565
    %v574 = vmul.f32 %v529, %v566
    %v575 = vmul.f32 %v531, %v567
    %v576 = vmul.f32 %v533, %v568
    %v577 = vmul.f32 %v535, %v569
    %v578 = vmul.f32 %v537, %v570
    %v579 = vmul.f32 %v539, %v571
    %580 = vrot.lane.b32.xlu0 %v112, 64
    %v581 = vpop.permute.xlu0 %580
    %582 = vrot.lane.b32.xlu0 %v117, 64
    %v583 = vpop.permute.xlu0 %582
    %v587 = vsel %vm491, %v572, 0
    %v590 = vsel %vm491, %v573, 0
    %592 = vmatprep.subr.mxu0 0.0
    %593 = vmatpush1.msra.mxu0 %v581
    %594 = vmatprep.subr.mxu0 0.0
    %595 = vmatpush1.msra.mxu0 %v583
    %596 = vmatprep.subr.mxu0 0.0
    %597 = vmatpush1.msra.mxu0 0.0
    %598 = vmatprep.subr.mxu0 0.0
    %599 = vmatpush1.msra.mxu0 0.0
    %600 = vmatprep.subr.mxu0 0.0
    %601 = vmatpush1.msra.mxu0 0.0
    %602 = vmatprep.subr.mxu0 0.0
    %603 = vmatpush1.msra.mxu0 0.0
    %604 = vmatprep.subr.mxu0 0.0
    %605 = vmatpush1.msra.mxu0 0.0
    %606 = vmatprep.subr.mxu0 0.0
    %607 = vmatpush1.msra.mxu0 0.0
    %608 = vmatprep.subr.mxu0 0.0
    %609 = vmatpush1.msra.mxu0 0.0
    %610 = vmatprep.subr.mxu0 0.0
    %611 = vmatpush1.msra.mxu0 0.0
    %612 = vmatprep.subr.mxu0 0.0
    %613 = vmatpush1.msra.mxu0 0.0
    %614 = vmatprep.subr.mxu0 0.0
    %615 = vmatpush1.msra.mxu0 0.0
    %616 = vmatprep.subr.mxu0 0.0
    %617 = vmatpush1.msra.mxu0 0.0
    %618 = vmatprep.subr.mxu0 0.0
    %619 = vmatpush1.msra.mxu0 0.0
    %620 = vmatprep.subr.mxu0 0.0
    %621 = vmatpush1.msra.mxu0 0.0
    %622 = vmatprep.subr.mxu0 0.0
    %623 = vmatpush1.msra.mxu0 0.0
    %624 = vmatprep.subr.mxu0 0.0
    %625 = vmatpush1.msra.mxu0 0.0
    %626 = vmatprep.subr.mxu0 0.0
    %627 = vmatpush1.msra.mxu0 0.0
    %628 = vmatprep.subr.mxu0 0.0
    %629 = vmatpush1.msra.mxu0 0.0
    %630 = vmatprep.subr.mxu0 0.0
    %631 = vmatpush1.msra.mxu0 0.0
    %632 = vmatprep.subr.mxu0 0.0
    %633 = vmatpush1.msra.mxu0 0.0
    %634 = vmatprep.subr.mxu0 0.0
    %635 = vmatpush1.msra.mxu0 0.0
    %636 = vmatprep.subr.mxu0 0.0
    %637 = vmatpush1.msra.mxu0 0.0
    %638 = vmatprep.subr.mxu0 0.0
    %639 = vmatpush1.msra.mxu0 0.0
    %640 = vmatprep.subr.mxu0 0.0
    %641 = vmatpush1.msra.mxu0 0.0
    %642 = vmatprep.subr.mxu0 0.0
    %643 = vmatpush1.msra.mxu0 0.0
    %644 = vmatprep.subr.mxu0 0.0
    %645 = vmatpush1.msra.mxu0 0.0
    %646 = vmatprep.subr.mxu0 0.0
    %647 = vmatpush1.msra.mxu0 0.0
    %648 = vmatprep.subr.mxu0 0.0
    %649 = vmatpush1.msra.mxu0 0.0
    %650 = vmatprep.subr.mxu0 0.0
    %651 = vmatpush1.msra.mxu0 0.0
    %652 = vmatprep.subr.mxu0 0.0
    %653 = vmatpush1.msra.mxu0 0.0
    %654 = vmatprep.subr.mxu0 0.0
    %655 = vmatpush1.msra.mxu0 0.0
    %656 = vmatprep.mubr.f32.mxu0 0.0
    %657 = vmatmul.mubr.f32.gmra.mrb[0].mxu0 %v587
    %v658 = vpop.f32.mrb[0].mxu0
    %v659 = vadd.f32 0.0, %v658
    %v660 = vpop.f32.mrb[0].mxu0
    %661 = vmatprep.mubr.f32.mxu0 0.0
    %662 = vmatmul.mubr.f32.gmra.mrb[0].mxu0 %v590
    %v663 = vpop.f32.mrb[0].mxu0
    %v664 = vadd.f32 0.0, %v663
    %v665 = vpop.f32.mrb[0].mxu0
    %666 = vdwg.mxu0
    %667 = vrot.lane.b32.xlu0 %v123, 64
    %v668 = vpop.permute.xlu0 %667
    %669 = vrot.lane.b32.xlu0 %v125, 64
    %v670 = vpop.permute.xlu0 %669
    %v674 = vsel %vm491, %v574, 0
    %v677 = vsel %vm491, %v575, 0
    %679 = vmatprep.subr.mxu0 0.0
    %680 = vmatpush1.msra.mxu0 %v668
    %681 = vmatprep.subr.mxu0 0.0
    %682 = vmatpush1.msra.mxu0 %v670
    %683 = vmatprep.subr.mxu0 0.0
    %684 = vmatpush1.msra.mxu0 0.0
    %685 = vmatprep.subr.mxu0 0.0
    %686 = vmatpush1.msra.mxu0 0.0
    %687 = vmatprep.subr.mxu0 0.0
    %688 = vmatpush1.msra.mxu0 0.0
    %689 = vmatprep.subr.mxu0 0.0
    %690 = vmatpush1.msra.mxu0 0.0
    %691 = vmatprep.subr.mxu0 0.0
    %692 = vmatpush1.msra.mxu0 0.0
    %693 = vmatprep.subr.mxu0 0.0
    %694 = vmatpush1.msra.mxu0 0.0
    %695 = vmatprep.subr.mxu0 0.0
    %696 = vmatpush1.msra.mxu0 0.0
    %697 = vmatprep.subr.mxu0 0.0
    %698 = vmatpush1.msra.mxu0 0.0
    %699 = vmatprep.subr.mxu0 0.0
    %700 = vmatpush1.msra.mxu0 0.0
    %701 = vmatprep.subr.mxu0 0.0
    %702 = vmatpush1.msra.mxu0 0.0
    %703 = vmatprep.subr.mxu0 0.0
    %704 = vmatpush1.msra.mxu0 0.0
    %705 = vmatprep.subr.mxu0 0.0
    %706 = vmatpush1.msra.mxu0 0.0
    %707 = vmatprep.subr.mxu0 0.0
    %708 = vmatpush1.msra.mxu0 0.0
    %709 = vmatprep.subr.mxu0 0.0
    %710 = vmatpush1.msra.mxu0 0.0
    %711 = vmatprep.subr.mxu0 0.0
    %712 = vmatpush1.msra.mxu0 0.0
    %713 = vmatprep.subr.mxu0 0.0
    %714 = vmatpush1.msra.mxu0 0.0
    %715 = vmatprep.subr.mxu0 0.0
    %716 = vmatpush1.msra.mxu0 0.0
    %717 = vmatprep.subr.mxu0 0.0
    %718 = vmatpush1.msra.mxu0 0.0
    %719 = vmatprep.subr.mxu0 0.0
    %720 = vmatpush1.msra.mxu0 0.0
    %721 = vmatprep.subr.mxu0 0.0
    %722 = vmatpush1.msra.mxu0 0.0
    %723 = vmatprep.subr.mxu0 0.0
    %724 = vmatpush1.msra.mxu0 0.0
    %725 = vmatprep.subr.mxu0 0.0
    %726 = vmatpush1.msra.mxu0 0.0
    %727 = vmatprep.subr.mxu0 0.0
    %728 = vmatpush1.msra.mxu0 0.0
    %729 = vmatprep.subr.mxu0 0.0
    %730 = vmatpush1.msra.mxu0 0.0
    %731 = vmatprep.subr.mxu0 0.0
    %732 = vmatpush1.msra.mxu0 0.0
    %733 = vmatprep.subr.mxu0 0.0
    %734 = vmatpush1.msra.mxu0 0.0
    %735 = vmatprep.subr.mxu0 0.0
    %736 = vmatpush1.msra.mxu0 0.0
    %737 = vmatprep.subr.mxu0 0.0
    %738 = vmatpush1.msra.mxu0 0.0
    %739 = vmatprep.subr.mxu0 0.0
    %740 = vmatpush1.msra.mxu0 0.0
    %741 = vmatprep.subr.mxu0 0.0
    %742 = vmatpush1.msra.mxu0 0.0
    %743 = vmatprep.mubr.f32.mxu0 0.0
    %744 = vmatmul.mubr.f32.gmra.mrb[0].mxu0 %v674
    %v745 = vpop.f32.mrb[0].mxu0
    %v746 = vadd.f32 0.0, %v745
    %v747 = vpop.f32.mrb[0].mxu0
    %748 = vmatprep.mubr.f32.mxu0 0.0
    %749 = vmatmul.mubr.f32.gmra.mrb[0].mxu0 %v677
    %v750 = vpop.f32.mrb[0].mxu0
    %v751 = vadd.f32 0.0, %v750
    %v752 = vpop.f32.mrb[0].mxu0
    %753 = vdwg.mxu0
    %754 = vrot.lane.b32.xlu0 %v127, 64
    %v755 = vpop.permute.xlu0 %754
    %756 = vrot.lane.b32.xlu0 %v129, 64
    %v757 = vpop.permute.xlu0 %756
    %v761 = vsel %vm491, %v576, 0
    %v764 = vsel %vm491, %v577, 0
    %766 = vmatprep.subr.mxu0 0.0
    %767 = vmatpush1.msra.mxu0 %v755
    %768 = vmatprep.subr.mxu0 0.0
    %769 = vmatpush1.msra.mxu0 %v757
    %770 = vmatprep.subr.mxu0 0.0
    %771 = vmatpush1.msra.mxu0 0.0
    %772 = vmatprep.subr.mxu0 0.0
    %773 = vmatpush1.msra.mxu0 0.0
    %774 = vmatprep.subr.mxu0 0.0
    %775 = vmatpush1.msra.mxu0 0.0
    %776 = vmatprep.subr.mxu0 0.0
    %777 = vmatpush1.msra.mxu0 0.0
    %778 = vmatprep.subr.mxu0 0.0
    %779 = vmatpush1.msra.mxu0 0.0
    %780 = vmatprep.subr.mxu0 0.0
    %781 = vmatpush1.msra.mxu0 0.0
    %782 = vmatprep.subr.mxu0 0.0
    %783 = vmatpush1.msra.mxu0 0.0
    %784 = vmatprep.subr.mxu0 0.0
    %785 = vmatpush1.msra.mxu0 0.0
    %786 = vmatprep.subr.mxu0 0.0
    %787 = vmatpush1.msra.mxu0 0.0
    %788 = vmatprep.subr.mxu0 0.0
    %789 = vmatpush1.msra.mxu0 0.0
    %790 = vmatprep.subr.mxu0 0.0
    %791 = vmatpush1.msra.mxu0 0.0
    %792 = vmatprep.subr.mxu0 0.0
    %793 = vmatpush1.msra.mxu0 0.0
    %794 = vmatprep.subr.mxu0 0.0
    %795 = vmatpush1.msra.mxu0 0.0
    %796 = vmatprep.subr.mxu0 0.0
    %797 = vmatpush1.msra.mxu0 0.0
    %798 = vmatprep.subr.mxu0 0.0
    %799 = vmatpush1.msra.mxu0 0.0
    %800 = vmatprep.subr.mxu0 0.0
    %801 = vmatpush1.msra.mxu0 0.0
    %802 = vmatprep.subr.mxu0 0.0
    %803 = vmatpush1.msra.mxu0 0.0
    %804 = vmatprep.subr.mxu0 0.0
    %805 = vmatpush1.msra.mxu0 0.0
    %806 = vmatprep.subr.mxu0 0.0
    %807 = vmatpush1.msra.mxu0 0.0
    %808 = vmatprep.subr.mxu0 0.0
    %809 = vmatpush1.msra.mxu0 0.0
    %810 = vmatprep.subr.mxu0 0.0
    %811 = vmatpush1.msra.mxu0 0.0
    %812 = vmatprep.subr.mxu0 0.0
    %813 = vmatpush1.msra.mxu0 0.0
    %814 = vmatprep.subr.mxu0 0.0
    %815 = vmatpush1.msra.mxu0 0.0
    %816 = vmatprep.subr.mxu0 0.0
    %817 = vmatpush1.msra.mxu0 0.0
    %818 = vmatprep.subr.mxu0 0.0
    %819 = vmatpush1.msra.mxu0 0.0
    %820 = vmatprep.subr.mxu0 0.0
    %821 = vmatpush1.msra.mxu0 0.0
    %822 = vmatprep.subr.mxu0 0.0
    %823 = vmatpush1.msra.mxu0 0.0
    %824 = vmatprep.subr.mxu0 0.0
    %825 = vmatpush1.msra.mxu0 0.0
    %826 = vmatprep.subr.mxu0 0.0
    %827 = vmatpush1.msra.mxu0 0.0
    %828 = vmatprep.subr.mxu0 0.0
    %829 = vmatpush1.msra.mxu0 0.0
    %830 = vmatprep.mubr.f32.mxu0 0.0
    %831 = vmatmul.mubr.f32.gmra.mrb[0].mxu0 %v761
    %v832 = vpop.f32.mrb[0].mxu0
    %v833 = vadd.f32 0.0, %v832
    %v834 = vpop.f32.mrb[0].mxu0
    %835 = vmatprep.mubr.f32.mxu0 0.0
    %836 = vmatmul.mubr.f32.gmra.mrb[0].mxu0 %v764
    %v837 = vpop.f32.mrb[0].mxu0
    %v838 = vadd.f32 0.0, %v837
    %v839 = vpop.f32.mrb[0].mxu0
    %840 = vdwg.mxu0
    %841 = vrot.lane.b32.xlu0 %v131, 64
    %v842 = vpop.permute.xlu0 %841
    %843 = vrot.lane.b32.xlu0 %v133, 64
    %v844 = vpop.permute.xlu0 %843
    %v848 = vsel %vm491, %v578, 0
    %v851 = vsel %vm491, %v579, 0
    %853 = vmatprep.subr.mxu0 0.0
    %854 = vmatpush1.msra.mxu0 %v842
    %855 = vmatprep.subr.mxu0 0.0
    %856 = vmatpush1.msra.mxu0 %v844
    %857 = vmatprep.subr.mxu0 0.0
    %858 = vmatpush1.msra.mxu0 0.0
    %859 = vmatprep.subr.mxu0 0.0
    %860 = vmatpush1.msra.mxu0 0.0
    %861 = vmatprep.subr.mxu0 0.0
    %862 = vmatpush1.msra.mxu0 0.0
    %863 = vmatprep.subr.mxu0 0.0
    %864 = vmatpush1.msra.mxu0 0.0
    %865 = vmatprep.subr.mxu0 0.0
    %866 = vmatpush1.msra.mxu0 0.0
    %867 = vmatprep.subr.mxu0 0.0
    %868 = vmatpush1.msra.mxu0 0.0
    %869 = vmatprep.subr.mxu0 0.0
    %870 = vmatpush1.msra.mxu0 0.0
    %871 = vmatprep.subr.mxu0 0.0
    %872 = vmatpush1.msra.mxu0 0.0
    %873 = vmatprep.subr.mxu0 0.0
    %874 = vmatpush1.msra.mxu0 0.0
    %875 = vmatprep.subr.mxu0 0.0
    %876 = vmatpush1.msra.mxu0 0.0
    %877 = vmatprep.subr.mxu0 0.0
    %878 = vmatpush1.msra.mxu0 0.0
    %879 = vmatprep.subr.mxu0 0.0
    %880 = vmatpush1.msra.mxu0 0.0
    %881 = vmatprep.subr.mxu0 0.0
    %882 = vmatpush1.msra.mxu0 0.0
    %883 = vmatprep.subr.mxu0 0.0
    %884 = vmatpush1.msra.mxu0 0.0
    %885 = vmatprep.subr.mxu0 0.0
    %886 = vmatpush1.msra.mxu0 0.0
    %887 = vmatprep.subr.mxu0 0.0
    %888 = vmatpush1.msra.mxu0 0.0
    %889 = vmatprep.subr.mxu0 0.0
    %890 = vmatpush1.msra.mxu0 0.0
    %891 = vmatprep.subr.mxu0 0.0
    %892 = vmatpush1.msra.mxu0 0.0
    %893 = vmatprep.subr.mxu0 0.0
    %894 = vmatpush1.msra.mxu0 0.0
    %895 = vmatprep.subr.mxu0 0.0
    %896 = vmatpush1.msra.mxu0 0.0
    %897 = vmatprep.subr.mxu0 0.0
    %898 = vmatpush1.msra.mxu0 0.0
    %899 = vmatprep.subr.mxu0 0.0
    %900 = vmatpush1.msra.mxu0 0.0
    %901 = vmatprep.subr.mxu0 0.0
    %902 = vmatpush1.msra.mxu0 0.0
    %903 = vmatprep.subr.mxu0 0.0
    %904 = vmatpush1.msra.mxu0 0.0
    %905 = vmatprep.subr.mxu0 0.0
    %906 = vmatpush1.msra.mxu0 0.0
    %907 = vmatprep.subr.mxu0 0.0
    %908 = vmatpush1.msra.mxu0 0.0
    %909 = vmatprep.subr.mxu0 0.0
    %910 = vmatpush1.msra.mxu0 0.0
    %911 = vmatprep.subr.mxu0 0.0
    %912 = vmatpush1.msra.mxu0 0.0
    %913 = vmatprep.subr.mxu0 0.0
    %914 = vmatpush1.msra.mxu0 0.0
    %915 = vmatprep.subr.mxu0 0.0
    %916 = vmatpush1.msra.mxu0 0.0
    %917 = vmatprep.mubr.f32.mxu0 0.0
    %918 = vmatmul.mubr.f32.gmra.mrb[0].mxu0 %v848
    %v919 = vpop.f32.mrb[0].mxu0
    %v920 = vadd.f32 0.0, %v919
    %v921 = vpop.f32.mrb[0].mxu0
    %922 = vmatprep.mubr.f32.mxu0 0.0
    %923 = vmatmul.mubr.f32.gmra.mrb[0].mxu0 %v851
    %v924 = vpop.f32.mrb[0].mxu0
    %v925 = vadd.f32 0.0, %v924
    %v926 = vpop.f32.mrb[0].mxu0
    %927 = vdwg.mxu0
    %930 = vrot.lane.b32.xlu0 %v746, 8
    %v931 = vpop.permute.xlu0 %930
    %932 = vrot.lane.b32.xlu0 %v751, 8
    %v933 = vpop.permute.xlu0 %932
    %938 = vrot.lane.b32.xlu0 %v833, 16
    %v939 = vpop.permute.xlu0 %938
    %940 = vrot.lane.b32.xlu0 %v838, 16
    %v941 = vpop.permute.xlu0 %940
    %946 = vrot.lane.b32.xlu0 %v920, 24
    %v947 = vpop.permute.xlu0 %946
    %948 = vrot.lane.b32.xlu0 %v925, 24
    %v949 = vpop.permute.xlu0 %948
    %v952 = vsel %vm146, %v659, %v931
    %v953 = vsel %vm146, %v664, %v933
    %v954 = vsel %vm491, %v952, %v939
    %v955 = vsel %vm491, %v953, %v941
    %vm956 = vcmask 195584
    %v957 = vsel %vm956, %v954, %v947
    %v958 = vsel %vm956, %v955, %v949
    %963 = vrot.lane.b32.xlu0 %v17, 32
    %v964 = vpop.permute.xlu0 %963
    %965 = vrot.lane.b32.xlu0 %v18, 32
    %v966 = vpop.permute.xlu0 %965
    %967 = vrot.lane.b32.xlu0 %v19, 32
    %v968 = vpop.permute.xlu0 %967
    %969 = vrot.lane.b32.xlu0 %v20, 32
    %v970 = vpop.permute.xlu0 %969
    %v976 = vsel %vm23, %v957, 0
    %v979 = vsel %vm23, %v958, 0
    %981 = vmatprep.subr.mxu0 0.0
    %982 = vmatpush1.msra.mxu0 %v964
    %983 = vmatprep.subr.mxu0 0.0
    %984 = vmatpush1.msra.mxu0 %v966
    %985 = vmatprep.subr.mxu0 0.0
    %986 = vmatpush1.msra.mxu0 %v968
    %987 = vmatprep.subr.mxu0 0.0
    %988 = vmatpush1.msra.mxu0 %v970
    %989 = vmatprep.subr.mxu0 0.0
    %990 = vmatpush1.msra.mxu0 0.0
    %991 = vmatprep.subr.mxu0 0.0
    %992 = vmatpush1.msra.mxu0 0.0
    %993 = vmatprep.subr.mxu0 0.0
    %994 = vmatpush1.msra.mxu0 0.0
    %995 = vmatprep.subr.mxu0 0.0
    %996 = vmatpush1.msra.mxu0 0.0
    %997 = vmatprep.subr.mxu0 0.0
    %998 = vmatpush1.msra.mxu0 0.0
    %999 = vmatprep.subr.mxu0 0.0
    %1000 = vmatpush1.msra.mxu0 0.0
    %1001 = vmatprep.subr.mxu0 0.0
    %1002 = vmatpush1.msra.mxu0 0.0
    %1003 = vmatprep.subr.mxu0 0.0
    %1004 = vmatpush1.msra.mxu0 0.0
    %1005 = vmatprep.subr.mxu0 0.0
    %1006 = vmatpush1.msra.mxu0 0.0
    %1007 = vmatprep.subr.mxu0 0.0
    %1008 = vmatpush1.msra.mxu0 0.0
    %1009 = vmatprep.subr.mxu0 0.0
    %1010 = vmatpush1.msra.mxu0 0.0
    %1011 = vmatprep.subr.mxu0 0.0
    %1012 = vmatpush1.msra.mxu0 0.0
    %1013 = vmatprep.subr.mxu0 0.0
    %1014 = vmatpush1.msra.mxu0 0.0
    %1015 = vmatprep.subr.mxu0 0.0
    %1016 = vmatpush1.msra.mxu0 0.0
    %1017 = vmatprep.subr.mxu0 0.0
    %1018 = vmatpush1.msra.mxu0 0.0
    %1019 = vmatprep.subr.mxu0 0.0
    %1020 = vmatpush1.msra.mxu0 0.0
    %1021 = vmatprep.subr.mxu0 0.0
    %1022 = vmatpush1.msra.mxu0 0.0
    %1023 = vmatprep.subr.mxu0 0.0
    %1024 = vmatpush1.msra.mxu0 0.0
    %1025 = vmatprep.subr.mxu0 0.0
    %1026 = vmatpush1.msra.mxu0 0.0
    %1027 = vmatprep.subr.mxu0 0.0
    %1028 = vmatpush1.msra.mxu0 0.0
    %1029 = vmatprep.subr.mxu0 0.0
    %1030 = vmatpush1.msra.mxu0 0.0
    %1031 = vmatprep.subr.mxu0 0.0
    %1032 = vmatpush1.msra.mxu0 0.0
    %1033 = vmatprep.subr.mxu0 0.0
    %1034 = vmatpush1.msra.mxu0 0.0
    %1035 = vmatprep.subr.mxu0 0.0
    %1036 = vmatpush1.msra.mxu0 0.0
    %1037 = vmatprep.subr.mxu0 0.0
    %1038 = vmatpush1.msra.mxu0 0.0
    %1039 = vmatprep.subr.mxu0 0.0
    %1040 = vmatpush1.msra.mxu0 0.0
    %1041 = vmatprep.subr.mxu0 0.0
    %1042 = vmatpush1.msra.mxu0 0.0
    %1043 = vmatprep.subr.mxu0 0.0
    %1044 = vmatpush1.msra.mxu0 0.0
    %1045 = vmatprep.mubr.f32.mxu0 0.0
    %1046 = vmatmul.mubr.f32.gmra.mrb[0].mxu0 %v976
    %v1047 = vpop.f32.mrb[0].mxu0
    %v1048 = vadd.f32 0.0, %v1047
    %v1049 = vpop.f32.mrb[0].mxu0
    %1050 = vmatprep.mubr.f32.mxu0 0.0
    %1051 = vmatmul.mubr.f32.gmra.mrb[0].mxu0 %v979
    %v1052 = vpop.f32.mrb[0].mxu0
    %v1053 = vadd.f32 0.0, %v1052
    %v1054 = vpop.f32.mrb[0].mxu0
    %1055 = vdwg.mxu0
    %v1056 = vadd.f32 %v15, %v1048
    %v1057 = vadd.f32 %v16, %v1053
    %1058 = vst.msk [vmem:[#allocation2] sm:$0xff] %vm23, %v1056
    %1059 = vst.msk [vmem:[#allocation2 + $0x8] sm:$0xff] %vm23, %v1057
    // Predicated region
    $region14: #{self_attention_forward.1} parent=1 // pred_check
      _
    $region15: #{self_attention_forward.1} parent=1 // pred_check_branch
      %1061 = sbr.rel (0) target = $region17
    $region16: #{self_attention_forward.1} parent=1 // pred_region
      %s1063 = ssub.s32 256, 256
      %1064 = vsyncadd [#allocation3], %s1063
      %s1065 = sshll.u32 [#allocation2], 4
      %s1066 = int_to_ptr.vmem [resolvable:$true] %s1065
      %1071 = dma.vmem_to_hbm [thread:$0]  %s1066, 256, %s3, [#allocation3], 128, 128, 8
    $region17: #{self_attention_forward.1} parent=1 // pred_fallthru
      _
    // Predicated region
    $region18: #{self_attention_forward.1} parent=1 // pred_check
      _
    $region19: #{self_attention_forward.1} parent=1 // pred_check_branch
      %1073 = sbr.rel (0) target = $region21
    $region20: #{self_attention_forward.1} parent=1 // pred_region
      %1074 = dma.done [#allocation3], 256
    $region21: #{self_attention_forward.1} parent=1 // pred_fallthru
      _
    %1075 = vsyncpa [#allocation3], 1

</llo_original>
